<compile_context>
chip_gen: v7x
topology: tpu7x:2x2x1
jax: 0.10.0
libtpu: 0.0.40
codegen_flags: <defaults>
</compile_context>

<pallas_src>
import jax
import jax.numpy as jnp
from jax.experimental import pallas as pl
from jax.experimental.pallas import tpu as pltpu

LANE = 128


def _round_up(v, m):
    return (v + m - 1) // m * m


def _vmem_budget_bytes():
    """~85% of physical VMEM (leaves Mosaic scratch headroom, esp. on v7x's 64 MiB)."""
    try:
        cap = int(pltpu.get_tpu_info().vmem_capacity_bytes)
    except Exception:
        cap = 64 * 1024 * 1024  # conservative fallback (v7x-sized)
    return int(cap * 0.85)


def _vmem_estimate(TH, Wp, Cin_p, Cmid_p, Cout_p, cb):
    """Rough per-grid-step VMEM bytes: double-buffered blocks + live intermediates."""
    TH2, TH4, Wp2 = TH + 2, TH + 4, Wp + 2
    x_blk = 4 * TH4 * Wp2 * Cin_p * cb
    out_blk = TH * Wp * Cout_p * 4
    w_bytes = 9 * (Cin_p * Cmid_p + Cmid_p * Cout_p) * cb + (Cmid_p + Cout_p) * 4
    pooled = TH4 * Wp2 * Cin_p * cb
    slab = max(TH2 * Wp * 3 * Cin_p, TH * Wp * 3 * Cmid_p) * cb
    accs = TH2 * Wp * Cmid_p * 4 + TH * Wp * Cout_p * 4
    y1p = TH2 * Wp2 * Cmid_p * cb
    live = pooled + 2 * slab + accs + y1p
    return 2 * (x_blk + out_blk + w_bytes) + live


def _pick_row_tile(N, Hp, Wp, Cin_p, Cmid_p, Cout_p, cb, budget):
    """Largest divisor of Hp whose tile fits the VMEM budget; split further if it helps megacore."""
    divs = [d for d in range(Hp, 0, -1) if Hp % d == 0]
    TH = 1
    for d in divs:
        if _vmem_estimate(d, Wp, Cin_p, Cmid_p, Cout_p, cb) <= budget:
            TH = d
            break
    if N * (Hp // TH) < 2:  # give the second TensorCore (v7x) something to do
        for d in divs:
            if Hp // d >= 2 and _vmem_estimate(d, Wp, Cin_p, Cmid_p, Cout_p, cb) <= budget:
                TH = d
                break
    return TH


def _make_down_kernel(TH, Wp, Hp, nt, Cin_p, Cmid_p, Cout_p, compute_dtype):
    TH2 = TH + 2  # conv1 output rows per tile (includes the +/-1 row halo for conv2)
    cdt = compute_dtype

    def kernel(x_ref, w1_ref, b1_ref, w2_ref, b2_ref, out_ref):
        # x_ref  : (4, TH+4, Wp+2, Cin_p)   4 pool taps; 2-pooled-row / 1-pooled-col zero halo
        # w1_ref : (9*Cin_p, Cmid_p)        conv1 weights (dy,dx,cin rows), BN1 scale folded in
        # b1_ref : (1, Cmid_p)  f32         BN1 shift
        # w2_ref : (9*Cmid_p, Cout_p)       conv2 weights, BN2 scale folded in
        # b2_ref : (1, Cout_p)  f32         BN2 shift
        # out_ref: (1, TH, Wp, Cout_p)      f32

        # ---- 2x2 max pool: pure VPU max over the pre-split tap axis ----
        taps = x_ref[...]
        pooled = jnp.maximum(jnp.maximum(taps[0], taps[1]),
                             jnp.maximum(taps[2], taps[3]))          # (TH+4, Wp+2, Cin_p)

        # ---- conv1 (3x3, pad=1) as 3 accumulating matmuls over dy, K = 3*Cin_p ----
        acc1 = None
        for dy in range(3):
            slab = jnp.concatenate(
                [pooled[dy:dy + TH2, dx:dx + Wp, :] for dx in range(3)], axis=-1)
            slab = slab.reshape(TH2 * Wp, 3 * Cin_p)
            w = w1_ref[pl.ds(dy * 3 * Cin_p, 3 * Cin_p), :]
            part = jnp.dot(slab, w, preferred_element_type=jnp.float32)
            acc1 = part if acc1 is None else acc1 + part
        y1 = jnp.maximum(acc1 + b1_ref[...], 0.0)                    # BN1 shift + ReLU (f32)
        y1 = y1.reshape(TH2, Wp, Cmid_p)

        # ---- zero the halo rows that fall outside the image (conv2's zero padding) ----
        if nt == 1:
            r0 = 0
        else:
            r0 = (pl.program_id(0) % nt) * TH
        rows = jax.lax.broadcasted_iota(jnp.int32, (TH2, Cmid_p), 0) + (r0 - 1)
        valid = jnp.logical_and(rows >= 0, rows < Hp)                # (TH2, Cmid_p)
        y1 = jnp.where(valid[:, None, :], y1, 0.0).astype(cdt)

        # ---- W zero-halo for conv2 (value-level; no scratch needed) ----
        zcol = jnp.zeros((TH2, 1, Cmid_p), cdt)
        y1p = jnp.concatenate([zcol, y1, zcol], axis=1)              # (TH2, Wp+2, Cmid_p)

        # ---- conv2 (3x3, pad=1) as 3 accumulating matmuls over dy, K = 3*Cmid_p ----
        acc2 = None
        for dy in range(3):
            slab = jnp.concatenate(
                [y1p[dy:dy + TH, dx:dx + Wp, :] for dx in range(3)], axis=-1)
            slab = slab.reshape(TH * Wp, 3 * Cmid_p)
            w = w2_ref[pl.ds(dy * 3 * Cmid_p, 3 * Cmid_p), :]
            part = jnp.dot(slab, w, preferred_element_type=jnp.float32)
            acc2 = part if acc2 is None else acc2 + part
        y2 = jnp.maximum(acc2 + b2_ref[...], 0.0)                    # BN2 shift + ReLU (f32)

        out_ref[...] = y2.reshape(1, TH, Wp, Cout_p).astype(out_ref.dtype)

    return kernel


def down_forward(x_nchw, params, *, compute_dtype=jnp.bfloat16, lane_pad=LANE):
    """Fused MaxPool2d(2) + DoubleConv.  x: (N, Cin, H, W) f32 -> (N, Cout, H//2, W//2) f32."""
    w1, s1, b1, w2, s2, b2 = params      # w*: HWIO (3,3,Ci,Co); s*/b*: (1,C) folded BN affine
    N, Cin, H, W = x_nchw.shape
    assert H % 2 == 0 and W % 2 == 0, "Down kernel assumes even H, W (MaxPool2d(2))."
    Hp, Wp = H // 2, W // 2
    Cmid, Cout = w1.shape[3], w2.shape[3]

    # Lane-dense channel padding (multiples of 128): unmasked stores, full MXU N-dim.
    Cin_p = _round_up(Cin, lane_pad)
    Cmid_p = _round_up(Cmid, lane_pad)
    Cout_p = _round_up(Cout, lane_pad)
    cb = jnp.dtype(compute_dtype).itemsize

    budget = _vmem_budget_bytes()
    TH = _pick_row_tile(N, Hp, Wp, Cin_p, Cmid_p, Cout_p, cb, budget)
    nt = Hp // TH
    vmem_limit = int(min(budget,
                         max(32 * 1024 * 1024,
                             2 * _vmem_estimate(TH, Wp, Cin_p, Cmid_p, Cout_p, cb))))

    # ---- weights: fold BN scale, pad channels, flatten to (9*Ci_p, Co_p) (rows = dy,dx,cin) ----
    w1k = jnp.pad(w1 * s1.reshape(1, 1, 1, Cmid),
                  ((0, 0), (0, 0), (0, Cin_p - Cin), (0, Cmid_p - Cmid)))
    w1k = w1k.reshape(9 * Cin_p, Cmid_p).astype(compute_dtype)
    w2k = jnp.pad(w2 * s2.reshape(1, 1, 1, Cout),
                  ((0, 0), (0, 0), (0, Cmid_p - Cmid), (0, Cout_p - Cout)))
    w2k = w2k.reshape(9 * Cmid_p, Cout_p).astype(compute_dtype)
    b1k = jnp.pad(b1.reshape(1, Cmid), ((0, 0), (0, Cmid_p - Cmid))).astype(jnp.float32)
    b2k = jnp.pad(b2.reshape(1, Cout), ((0, 0), (0, Cout_p - Cout))).astype(jnp.float32)

    # ---- input: pad channels + spatial (2 pooled rows / 1 pooled col of zeros), split the 2x2
    #      pool window onto a leading tap axis, put channels last (one XLA transpose total). ----
    xp = jnp.pad(x_nchw, ((0, 0), (0, Cin_p - Cin), (4, 4), (2, 2)))
    xp = xp.reshape(N, Cin_p, Hp + 4, 2, Wp + 2, 2)
    xp = jnp.transpose(xp, (0, 3, 5, 2, 4, 1))            # (N, 2, 2, Hp+4, Wp+2, Cin_p)
    xp = xp.reshape(N, 4, Hp + 4, Wp + 2, Cin_p)

    # Row tiles of pooled height TH with a 2-pooled-row halo on each side.
    if nt == 1:
        xt = xp[:, None]
    else:
        xt = jnp.stack([xp[:, :, t * TH: t * TH + TH + 4] for t in range(nt)], axis=1)
    xt = xt.reshape(N * nt * 4, TH + 4, Wp + 2, Cin_p).astype(compute_dtype)

    kernel = _make_down_kernel(TH, Wp, Hp, nt, Cin_p, Cmid_p, Cout_p, compute_dtype)

    out = pl.pallas_call(
        kernel,
        out_shape=jax.ShapeDtypeStruct((N * nt, TH, Wp, Cout_p), jnp.float32),
        grid_spec=pltpu.PrefetchScalarGridSpec(
            num_scalar_prefetch=0,
            grid=(N * nt,),
            in_specs=[
                pl.BlockSpec((4, TH + 4, Wp + 2, Cin_p), lambda g: (g, 0, 0, 0)),
                pl.BlockSpec((9 * Cin_p, Cmid_p), lambda g: (0, 0)),
                pl.BlockSpec((1, Cmid_p), lambda g: (0, 0)),
                pl.BlockSpec((9 * Cmid_p, Cout_p), lambda g: (0, 0)),
                pl.BlockSpec((1, Cout_p), lambda g: (0, 0)),
            ],
            out_specs=pl.BlockSpec((1, TH, Wp, Cout_p), lambda g: (g, 0, 0, 0)),
        ),
        compiler_params=pltpu.CompilerParams(
            dimension_semantics=("parallel",),
            vmem_limit_bytes=vmem_limit,
        ),
    )(xt, w1k, b1k, w2k, b2k)

    out = out.reshape(N, Hp, Wp, Cout_p)[:, :, :, :Cout]
    return jnp.transpose(out, (0, 3, 1, 2))               # back to NCHW (PyTorch layout)


def ref_forward(x_nchw, params):
    """Pure-JAX (XLA) reference with identical semantics, for correctness checking."""
    w1, s1, b1, w2, s2, b2 = params
    x = jnp.transpose(x_nchw, (0, 2, 3, 1))
    p = jax.lax.reduce_window(x, -jnp.inf, jax.lax.max, (1, 2, 2, 1), (1, 2, 2, 1), 'VALID')
    y = jax.lax.conv_general_dilated(p, w1, (1, 1), 'SAME',
                                     dimension_numbers=('NHWC', 'HWIO', 'NHWC'),
                                     precision=jax.lax.Precision.HIGHEST)
    y = jnp.maximum(y * s1 + b1, 0.0)
    y = jax.lax.conv_general_dilated(y, w2, (1, 1), 'SAME',
                                     dimension_numbers=('NHWC', 'HWIO', 'NHWC'),
                                     precision=jax.lax.Precision.HIGHEST)
    y = jnp.maximum(y * s2 + b2, 0.0)
    return jnp.transpose(y, (0, 3, 1, 2))


def make_params(key, in_channels, out_channels):
    """Deterministic synthetic parameters matching Down(in_channels, out_channels).

    Conv weights are in HWIO layout (3,3,Ci,Co); BatchNorm running stats are pre-folded into a
    per-channel affine (scale, shift), matching PyTorch eval() semantics.
    """
    mid_channels = out_channels
    ks = jax.random.split(key, 10)
    eps = 1e-5

    w1_oihw = 0.2 * jax.random.normal(ks[0], (mid_channels, in_channels, 3, 3), jnp.float32)
    w2_oihw = 0.2 * jax.random.normal(ks[1], (out_channels, mid_channels, 3, 3), jnp.float32)
    w1 = jnp.transpose(w1_oihw, (2, 3, 1, 0))   # -> HWIO
    w2 = jnp.transpose(w2_oihw, (2, 3, 1, 0))

    def bn(kg, kb, km, kv, c):
        gamma = 1.0 + 0.1 * jax.random.normal(kg, (c,), jnp.float32)
        beta = 0.1 * jax.random.normal(kb, (c,), jnp.float32)
        rmean = 0.1 * jax.random.normal(km, (c,), jnp.float32)
        rvar = 0.9 + 0.1 * jnp.abs(jax.random.normal(kv, (c,), jnp.float32))
        scale = gamma / jnp.sqrt(rvar + eps)
        shift = beta - rmean * scale
        return scale.reshape(1, c), shift.reshape(1, c)

    s1, b1 = bn(ks[2], ks[3], ks[4], ks[5], mid_channels)
    s2, b2 = bn(ks[6], ks[7], ks[8], ks[9], out_channels)
    return (w1, s1, b1, w2, s2, b2)


if __name__ == "__main__":
    key = jax.random.PRNGKey(0)
    k_x, k_p = jax.random.split(key)

    N, Cin, H, W = 2, 4, 16, 16
    Cout = 8

    x = jax.random.normal(k_x, (N, Cin, H, W), jnp.float32)
    params = make_params(k_p, Cin, Cout)

    ref = jax.block_until_ready(ref_forward(x, params))

    # f32 compute path: tight check against the f32 reference.
    out_f32 = jax.block_until_ready(
        jax.jit(lambda a, p: down_forward(a, p, compute_dtype=jnp.float32))(x, params))
    assert out_f32.shape == (N, Cout, H // 2, W // 2), out_f32.shape
    err_f32 = float(jnp.max(jnp.abs(out_f32 - ref)))
    assert jnp.allclose(out_f32, ref, atol=1e-2, rtol=1e-2), err_f32

    # Default (bf16 compute, f32 accumulate) path: looser tolerance vs. the f32 reference.
    out_bf16 = jax.block_until_ready(jax.jit(down_forward)(x, params))
    assert out_bf16.shape == (N, Cout, H // 2, W // 2), out_bf16.shape
    err_bf16 = float(jnp.max(jnp.abs(out_bf16 - ref)))
    assert jnp.allclose(out_bf16, ref, atol=1e-1, rtol=1e-1), err_bf16

    print("KERNEL_OK")
</pallas_src>

<mosaic_0001>
module attributes {stable_mosaic.version = 11 : i64} {
  func.func @kernel(%arg0: i32, %arg1: memref<4x12x10x128xf32, #tpu.memory_space<vmem>>, %arg2: memref<1152x128xf32, #tpu.memory_space<vmem>>, %arg3: memref<1x128xf32, #tpu.memory_space<vmem>>, %arg4: memref<1152x128xf32, #tpu.memory_space<vmem>>, %arg5: memref<1x128xf32, #tpu.memory_space<vmem>>, %arg6: memref<1x8x8x128xf32, #tpu.memory_space<vmem>>) attributes {dimension_semantics = [#tpu.dimension_semantics<parallel>], iteration_bounds = array<i64: 2>, scalar_prefetch = 0 : i64, scratch_operands = 0 : i64, tpu.core_type = #tpu.core_type<tc>, window_params = [{transform_indices = @transform_0, window_bounds = array<i64: 4, 12, 10, 128>}, {pipeline_mode = #tpu.pipeline_mode<synchronous>, transform_indices = @transform_1, window_bounds = array<i64: 1152, 128>}, {pipeline_mode = #tpu.pipeline_mode<synchronous>, transform_indices = @transform_2, window_bounds = array<i64: 1, 128>}, {pipeline_mode = #tpu.pipeline_mode<synchronous>, transform_indices = @transform_3, window_bounds = array<i64: 1152, 128>}, {pipeline_mode = #tpu.pipeline_mode<synchronous>, transform_indices = @transform_4, window_bounds = array<i64: 1, 128>}, {transform_indices = @transform_5, window_bounds = array<i64: 1, 8, 8, 128>}]} {
    %c0 = arith.constant 0 : index
    %c0_0 = arith.constant 0 : index
    %c0_1 = arith.constant 0 : index
    %c0_2 = arith.constant 0 : index
    %0 = vector.load %arg1[%c0, %c0_0, %c0_1, %c0_2] : memref<4x12x10x128xf32, #tpu.memory_space<vmem>>, vector<4x12x10x128xf32>
    %1 = vector.extract_strided_slice %0 {offsets = [0, 0, 0, 0], sizes = [1, 12, 10, 128], strides = [1, 1, 1, 1]} : vector<4x12x10x128xf32> to vector<1x12x10x128xf32>
    %2 = vector.shape_cast %1 : vector<1x12x10x128xf32> to vector<12x10x128xf32>
    %3 = vector.extract_strided_slice %0 {offsets = [1, 0, 0, 0], sizes = [1, 12, 10, 128], strides = [1, 1, 1, 1]} : vector<4x12x10x128xf32> to vector<1x12x10x128xf32>
    %4 = vector.shape_cast %3 : vector<1x12x10x128xf32> to vector<12x10x128xf32>
    %5 = arith.maximumf %2, %4 : vector<12x10x128xf32>
    %6 = vector.extract_strided_slice %0 {offsets = [2, 0, 0, 0], sizes = [1, 12, 10, 128], strides = [1, 1, 1, 1]} : vector<4x12x10x128xf32> to vector<1x12x10x128xf32>
    %7 = vector.shape_cast %6 : vector<1x12x10x128xf32> to vector<12x10x128xf32>
    %8 = vector.extract_strided_slice %0 {offsets = [3, 0, 0, 0], sizes = [1, 12, 10, 128], strides = [1, 1, 1, 1]} : vector<4x12x10x128xf32> to vector<1x12x10x128xf32>
    %9 = vector.shape_cast %8 : vector<1x12x10x128xf32> to vector<12x10x128xf32>
    %10 = arith.maximumf %7, %9 : vector<12x10x128xf32>
    %11 = arith.maximumf %5, %10 : vector<12x10x128xf32>
    %12 = vector.extract_strided_slice %11 {offsets = [0, 0, 0], sizes = [10, 8, 128], strides = [1, 1, 1]} : vector<12x10x128xf32> to vector<10x8x128xf32>
    %13 = vector.extract_strided_slice %11 {offsets = [0, 1, 0], sizes = [10, 8, 128], strides = [1, 1, 1]} : vector<12x10x128xf32> to vector<10x8x128xf32>
    %14 = vector.extract_strided_slice %11 {offsets = [0, 2, 0], sizes = [10, 8, 128], strides = [1, 1, 1]} : vector<12x10x128xf32> to vector<10x8x128xf32>
    %15 = tpu.concatenate %12, %13, %14 in 2 : vector<10x8x128xf32>, vector<10x8x128xf32>, vector<10x8x128xf32> -> vector<10x8x384xf32>
    %16 = vector.shape_cast %15 : vector<10x8x384xf32> to vector<80x384xf32>
    %c0_3 = arith.constant 0 : index
    %c0_4 = arith.constant 0 : index
    %17 = vector.load %arg2[%c0_3, %c0_4] : memref<1152x128xf32, #tpu.memory_space<vmem>>, vector<384x128xf32>
    %cst = arith.constant dense<0.000000e+00> : vector<80x128xf32>
    %18 = tpu.matmul %16, %17, %cst {dimension_numbers = #tpu.dot_dimension_numbers<[1], [0], [0], [1], [0, 0, 1, 1], [], []>} : vector<80x384xf32>, vector<384x128xf32>, vector<80x128xf32> -> vector<80x128xf32>
    %19 = vector.extract_strided_slice %11 {offsets = [1, 0, 0], sizes = [10, 8, 128], strides = [1, 1, 1]} : vector<12x10x128xf32> to vector<10x8x128xf32>
    %20 = vector.extract_strided_slice %11 {offsets = [1, 1, 0], sizes = [10, 8, 128], strides = [1, 1, 1]} : vector<12x10x128xf32> to vector<10x8x128xf32>
    %21 = vector.extract_strided_slice %11 {offsets = [1, 2, 0], sizes = [10, 8, 128], strides = [1, 1, 1]} : vector<12x10x128xf32> to vector<10x8x128xf32>
    %22 = tpu.concatenate %19, %20, %21 in 2 : vector<10x8x128xf32>, vector<10x8x128xf32>, vector<10x8x128xf32> -> vector<10x8x384xf32>
    %23 = vector.shape_cast %22 : vector<10x8x384xf32> to vector<80x384xf32>
    %c384 = arith.constant 384 : index
    %c0_5 = arith.constant 0 : index
    %24 = vector.load %arg2[%c384, %c0_5] : memref<1152x128xf32, #tpu.memory_space<vmem>>, vector<384x128xf32>
    %cst_6 = arith.constant dense<0.000000e+00> : vector<80x128xf32>
    %25 = tpu.matmul %23, %24, %cst_6 {dimension_numbers = #tpu.dot_dimension_numbers<[1], [0], [0], [1], [0, 0, 1, 1], [], []>} : vector<80x384xf32>, vector<384x128xf32>, vector<80x128xf32> -> vector<80x128xf32>
    %26 = arith.addf %18, %25 : vector<80x128xf32>
    %27 = vector.extract_strided_slice %11 {offsets = [2, 0, 0], sizes = [10, 8, 128], strides = [1, 1, 1]} : vector<12x10x128xf32> to vector<10x8x128xf32>
    %28 = vector.extract_strided_slice %11 {offsets = [2, 1, 0], sizes = [10, 8, 128], strides = [1, 1, 1]} : vector<12x10x128xf32> to vector<10x8x128xf32>
    %29 = vector.extract_strided_slice %11 {offsets = [2, 2, 0], sizes = [10, 8, 128], strides = [1, 1, 1]} : vector<12x10x128xf32> to vector<10x8x128xf32>
    %30 = tpu.concatenate %27, %28, %29 in 2 : vector<10x8x128xf32>, vector<10x8x128xf32>, vector<10x8x128xf32> -> vector<10x8x384xf32>
    %31 = vector.shape_cast %30 : vector<10x8x384xf32> to vector<80x384xf32>
    %c768 = arith.constant 768 : index
    %c0_7 = arith.constant 0 : index
    %32 = vector.load %arg2[%c768, %c0_7] : memref<1152x128xf32, #tpu.memory_space<vmem>>, vector<384x128xf32>
    %cst_8 = arith.constant dense<0.000000e+00> : vector<80x128xf32>
    %33 = tpu.matmul %31, %32, %cst_8 {dimension_numbers = #tpu.dot_dimension_numbers<[1], [0], [0], [1], [0, 0, 1, 1], [], []>} : vector<80x384xf32>, vector<384x128xf32>, vector<80x128xf32> -> vector<80x128xf32>
    %34 = arith.addf %26, %33 : vector<80x128xf32>
    %c0_9 = arith.constant 0 : index
    %c0_10 = arith.constant 0 : index
    %35 = vector.load %arg3[%c0_9, %c0_10] : memref<1x128xf32, #tpu.memory_space<vmem>>, vector<1x128xf32>
    %36 = vector.broadcast %35 : vector<1x128xf32> to vector<80x128xf32>
    %37 = arith.addf %34, %36 : vector<80x128xf32>
    %cst_11 = arith.constant 0.000000e+00 : f32
    %38 = vector.broadcast %cst_11 : f32 to vector<80x128xf32>
    %39 = arith.maximumf %37, %38 : vector<80x128xf32>
    %40 = vector.shape_cast %39 : vector<80x128xf32> to vector<10x8x128xf32>
    %41 = tpu.iota {dimensions = array<i32: 0>} : vector<10x128xi32>
    %c-1_i32 = arith.constant -1 : i32
    %42 = vector.broadcast %c-1_i32 : i32 to vector<10x128xi32>
    %43 = arith.addi %41, %42 : vector<10x128xi32>
    %c0_i32 = arith.constant 0 : i32
    %44 = vector.broadcast %c0_i32 : i32 to vector<10x128xi32>
    %45 = arith.cmpi sge, %43, %44 : vector<10x128xi32>
    %c8_i32 = arith.constant 8 : i32
    %46 = vector.broadcast %c8_i32 : i32 to vector<10x128xi32>
    %47 = arith.cmpi slt, %43, %46 : vector<10x128xi32>
    %48 = arith.andi %45, %47 : vector<10x128xi1>
    %49 = vector.shape_cast %48 : vector<10x128xi1> to vector<10x1x128xi1>
    %cst_12 = arith.constant 0.000000e+00 : f32
    %50 = vector.shape_cast %49 : vector<10x1x128xi1> to vector<10x1x128xi1>
    %51 = vector.broadcast %50 : vector<10x1x128xi1> to vector<10x8x128xi1>
    %52 = vector.broadcast %cst_12 : f32 to vector<10x8x128xf32>
    %53 = arith.select %51, %40, %52 : vector<10x8x128xi1>, vector<10x8x128xf32>
    %cst_13 = arith.constant 0.000000e+00 : f32
    %54 = vector.broadcast %cst_13 : f32 to vector<10x1x128xf32>
    %55 = tpu.concatenate %54, %53, %54 in 1 : vector<10x1x128xf32>, vector<10x8x128xf32>, vector<10x1x128xf32> -> vector<10x10x128xf32>
    %56 = vector.extract_strided_slice %55 {offsets = [0, 0, 0], sizes = [8, 8, 128], strides = [1, 1, 1]} : vector<10x10x128xf32> to vector<8x8x128xf32>
    %57 = vector.extract_strided_slice %55 {offsets = [0, 1, 0], sizes = [8, 8, 128], strides = [1, 1, 1]} : vector<10x10x128xf32> to vector<8x8x128xf32>
    %58 = vector.extract_strided_slice %55 {offsets = [0, 2, 0], sizes = [8, 8, 128], strides = [1, 1, 1]} : vector<10x10x128xf32> to vector<8x8x128xf32>
    %59 = tpu.concatenate %56, %57, %58 in 2 : vector<8x8x128xf32>, vector<8x8x128xf32>, vector<8x8x128xf32> -> vector<8x8x384xf32>
    %60 = vector.shape_cast %59 : vector<8x8x384xf32> to vector<64x384xf32>
    %c0_14 = arith.constant 0 : index
    %c0_15 = arith.constant 0 : index
    %61 = vector.load %arg4[%c0_14, %c0_15] : memref<1152x128xf32, #tpu.memory_space<vmem>>, vector<384x128xf32>
    %cst_16 = arith.constant dense<0.000000e+00> : vector<64x128xf32>
    %62 = tpu.matmul %60, %61, %cst_16 {dimension_numbers = #tpu.dot_dimension_numbers<[1], [0], [0], [1], [0, 0, 1, 1], [], []>} : vector<64x384xf32>, vector<384x128xf32>, vector<64x128xf32> -> vector<64x128xf32>
    %63 = vector.extract_strided_slice %55 {offsets = [1, 0, 0], sizes = [8, 8, 128], strides = [1, 1, 1]} : vector<10x10x128xf32> to vector<8x8x128xf32>
    %64 = vector.extract_strided_slice %55 {offsets = [1, 1, 0], sizes = [8, 8, 128], strides = [1, 1, 1]} : vector<10x10x128xf32> to vector<8x8x128xf32>
    %65 = vector.extract_strided_slice %55 {offsets = [1, 2, 0], sizes = [8, 8, 128], strides = [1, 1, 1]} : vector<10x10x128xf32> to vector<8x8x128xf32>
    %66 = tpu.concatenate %63, %64, %65 in 2 : vector<8x8x128xf32>, vector<8x8x128xf32>, vector<8x8x128xf32> -> vector<8x8x384xf32>
    %67 = vector.shape_cast %66 : vector<8x8x384xf32> to vector<64x384xf32>
    %c384_17 = arith.constant 384 : index
    %c0_18 = arith.constant 0 : index
    %68 = vector.load %arg4[%c384_17, %c0_18] : memref<1152x128xf32, #tpu.memory_space<vmem>>, vector<384x128xf32>
    %cst_19 = arith.constant dense<0.000000e+00> : vector<64x128xf32>
    %69 = tpu.matmul %67, %68, %cst_19 {dimension_numbers = #tpu.dot_dimension_numbers<[1], [0], [0], [1], [0, 0, 1, 1], [], []>} : vector<64x384xf32>, vector<384x128xf32>, vector<64x128xf32> -> vector<64x128xf32>
    %70 = arith.addf %62, %69 : vector<64x128xf32>
    %71 = vector.extract_strided_slice %55 {offsets = [2, 0, 0], sizes = [8, 8, 128], strides = [1, 1, 1]} : vector<10x10x128xf32> to vector<8x8x128xf32>
    %72 = vector.extract_strided_slice %55 {offsets = [2, 1, 0], sizes = [8, 8, 128], strides = [1, 1, 1]} : vector<10x10x128xf32> to vector<8x8x128xf32>
    %73 = vector.extract_strided_slice %55 {offsets = [2, 2, 0], sizes = [8, 8, 128], strides = [1, 1, 1]} : vector<10x10x128xf32> to vector<8x8x128xf32>
    %74 = tpu.concatenate %71, %72, %73 in 2 : vector<8x8x128xf32>, vector<8x8x128xf32>, vector<8x8x128xf32> -> vector<8x8x384xf32>
    %75 = vector.shape_cast %74 : vector<8x8x384xf32> to vector<64x384xf32>
    %c768_20 = arith.constant 768 : index
    %c0_21 = arith.constant 0 : index
    %76 = vector.load %arg4[%c768_20, %c0_21] : memref<1152x128xf32, #tpu.memory_space<vmem>>, vector<384x128xf32>
    %cst_22 = arith.constant dense<0.000000e+00> : vector<64x128xf32>
    %77 = tpu.matmul %75, %76, %cst_22 {dimension_numbers = #tpu.dot_dimension_numbers<[1], [0], [0], [1], [0, 0, 1, 1], [], []>} : vector<64x384xf32>, vector<384x128xf32>, vector<64x128xf32> -> vector<64x128xf32>
    %78 = arith.addf %70, %77 : vector<64x128xf32>
    %c0_23 = arith.constant 0 : index
    %c0_24 = arith.constant 0 : index
    %79 = vector.load %arg5[%c0_23, %c0_24] : memref<1x128xf32, #tpu.memory_space<vmem>>, vector<1x128xf32>
    %80 = vector.broadcast %79 : vector<1x128xf32> to vector<64x128xf32>
    %81 = arith.addf %78, %80 : vector<64x128xf32>
    %cst_25 = arith.constant 0.000000e+00 : f32
    %82 = vector.broadcast %cst_25 : f32 to vector<64x128xf32>
    %83 = arith.maximumf %81, %82 : vector<64x128xf32>
    %84 = vector.shape_cast %83 : vector<64x128xf32> to vector<1x8x8x128xf32>
    %c0_26 = arith.constant 0 : index
    %c0_27 = arith.constant 0 : index
    %c0_28 = arith.constant 0 : index
    %c0_29 = arith.constant 0 : index
    %85 = vector.load %arg6[%c0_26, %c0_27, %c0_28, %c0_29] : memref<1x8x8x128xf32, #tpu.memory_space<vmem>>, vector<1x8x8x128xf32>
    tpu.vector_store %arg6[%c0_26, %c0_27, %c0_28, %c0_29], %84 {strides = array<i32>} : memref<1x8x8x128xf32, #tpu.memory_space<vmem>>, vector<1x8x8x128xf32>,
    return
  }
  func.func @transform_0(%arg0: i32) -> (i32, i32, i32, i32) {
    %c0_i32 = arith.constant 0 : i32
    %c0_i32_0 = arith.constant 0 : i32
    %c0_i32_1 = arith.constant 0 : i32
    %c0_i32_2 = arith.constant 0 : i32
    return %arg0, %c0_i32, %c0_i32_0, %c0_i32_1 : i32, i32, i32, i32
  }
  func.func @transform_1(%arg0: i32) -> (i32, i32) {
    %c0_i32 = arith.constant 0 : i32
    %c0_i32_0 = arith.constant 0 : i32
    %c0_i32_1 = arith.constant 0 : i32
    return %c0_i32, %c0_i32_0 : i32, i32
  }
  func.func @transform_2(%arg0: i32) -> (i32, i32) {
    %c0_i32 = arith.constant 0 : i32
    %c0_i32_0 = arith.constant 0 : i32
    %c0_i32_1 = arith.constant 0 : i32
    return %c0_i32, %c0_i32_0 : i32, i32
  }
  func.func @transform_3(%arg0: i32) -> (i32, i32) {
    %c0_i32 = arith.constant 0 : i32
    %c0_i32_0 = arith.constant 0 : i32
    %c0_i32_1 = arith.constant 0 : i32
    return %c0_i32, %c0_i32_0 : i32, i32
  }
  func.func @transform_4(%arg0: i32) -> (i32, i32) {
    %c0_i32 = arith.constant 0 : i32
    %c0_i32_0 = arith.constant 0 : i32
    %c0_i32_1 = arith.constant 0 : i32
    return %c0_i32, %c0_i32_0 : i32, i32
  }
  func.func @transform_5(%arg0: i32) -> (i32, i32, i32, i32) {
    %c0_i32 = arith.constant 0 : i32
    %c0_i32_0 = arith.constant 0 : i32
    %c0_i32_1 = arith.constant 0 : i32
    %c0_i32_2 = arith.constant 0 : i32
    return %arg0, %c0_i32, %c0_i32_0, %c0_i32_1 : i32, i32, i32, i32
  }
}

</mosaic_0001>

<llo_original>
// kernel: _lambda_.1
$region0: #{_lambda_.1}
  #allocation0 [shape = 'u32[]', space=smem, size = 0x4, offset = 0x4, fixed_abs, tag = 'smem constant byte address 0x4 - core index']
  #allocation1 [shape = 'u32[144,128]{1,0:T(1,128)}', space=vmem, size = 0x12000, scoped, tag = 'internal scratch']
  %s0 = inlined_call_operand.vmem [shape: f32[8,12,10,128], index: 0, kind: input, shape index: {}]
  %s1 = inlined_call_operand.vmem [shape: f32[1152,128], index: 1, kind: input, shape index: {}]
  %s2 = inlined_call_operand.vmem [shape: f32[1,128], index: 2, kind: input, shape index: {}]
  %s3 = inlined_call_operand.vmem [shape: f32[1152,128], index: 3, kind: input, shape index: {}]
  %s4 = inlined_call_operand.vmem [shape: f32[1,128], index: 4, kind: input, shape index: {}]
  %s5 = inlined_call_operand.vmem [shape: f32[2,8,8,128], index: 5, kind: output, shape index: {}]
  %s6 = sld [smem:[#allocation0]]
  $region53: #{_lambda_.1} parent=0
    _
  %s8 = ssub.s32 1, %s6
  %s9 = scalar_select 0, %s8, %s6
  loop: start=0, step=1, limit=4
  $region2: #{_lambda_.1} parent=0 // loop_pre_header
    _
  $region3: #{_lambda_.1} parent=0 // loop_header
    %s11 = sphi 0, %s15
    %p12 = scmp.ge.s32.totalorder %s11, 4
    %s21 = sphi 0, %s23
    %s24 = sphi 0, %s21
    %s25 = sphi 0, %s24
    %s41 = sphi 0, %s25
    %s45 = sphi 0, %s45
    %s47 = sphi 0, %s45
    %s48 = sphi 0, %s47
    %s62 = sphi 0, %s48
    %s66 = sphi 0, %s66
    %s68 = sphi 0, %s66
    %s69 = sphi 0, %s68
    %s83 = sphi 0, %s69
    %s87 = sphi 0, %s87
    %s89 = sphi 0, %s87
    %s90 = sphi 0, %s89
    %s104 = sphi 0, %s90
    %s108 = sphi 0, %s108
    %s110 = sphi 0, %s108
    %s111 = sphi 0, %s110
    %s125 = sphi 0, %s111
    %s131 = sphi 0, %s133
    %s134 = sphi 0, %s131
    %s135 = sphi 0, %s134
    %s151 = sphi 0, %s135
  $region4: #{_lambda_.1} parent=0 // loop_header_branch
    %14 = sbr.rel (%p12) target = $region8
  $region5: #{_lambda_.1} parent=0 // loop_body
    %s16 = ssub.s32 %s11, 1
    %s17 = ssub.s32 %s11, 2
    %s18 = sadd.s32 %s11, 1
    %s19 = ssub.s32 %s11, %s18
    %p20 = scmp.eq.s32.totalorder %s19, 0
    %s22 = sadd.s32 %s21, 1
    %s23 = scalar_select %p20, %s21, %s22
    %p26 = pneg %p20
    %p27 = scmp.eq.s32.totalorder %s11, 1
    %p28 = por %p26, %p27
    %p29 = scmp.ne.s32.totalorder %s21, %s24
    %p30 = scmp.eq.s32.totalorder %s11, 0
    %p31 = por %p29, %p30
    %p32 = scmp.ne.s32.totalorder %s21, %s24
    %p33 = scmp.eq.s32.totalorder %s16, 1
    %p34 = por %p32, %p33
    %p35 = scmp.ne.s32.totalorder %s24, %s25
    %p36 = scmp.eq.s32.totalorder %s16, 0
    %p37 = por %p35, %p36
    %p38 = scmp.ne.s32.totalorder %s24, %s25
    %p39 = scmp.eq.s32.totalorder %s17, 1
    %p40 = por %p38, %p39
    %p42 = scmp.ne.s32.totalorder %s25, %s41
    %p43 = scmp.eq.s32.totalorder %s17, 0
    %p44 = por %p42, %p43
    %s46 = sadd.s32 %s45, 1
    %p49 = scmp.eq.s32.totalorder %s11, 1
    %p50 = scmp.ne.s32.totalorder %s45, %s47
    %p51 = scmp.eq.s32.totalorder %s11, 0
    %p52 = por %p50, %p51
    %p53 = scmp.ne.s32.totalorder %s45, %s47
    %p54 = scmp.eq.s32.totalorder %s16, 1
    %p55 = por %p53, %p54
    %p56 = scmp.ne.s32.totalorder %s47, %s48
    %p57 = scmp.eq.s32.totalorder %s16, 0
    %p58 = por %p56, %p57
    %p59 = scmp.ne.s32.totalorder %s47, %s48
    %p60 = scmp.eq.s32.totalorder %s17, 1
    %p61 = por %p59, %p60
    %p63 = scmp.ne.s32.totalorder %s48, %s62
    %p64 = scmp.eq.s32.totalorder %s17, 0
    %p65 = por %p63, %p64
    %s67 = sadd.s32 %s66, 1
    %p70 = scmp.eq.s32.totalorder %s11, 1
    %p71 = scmp.ne.s32.totalorder %s66, %s68
    %p72 = scmp.eq.s32.totalorder %s11, 0
    %p73 = por %p71, %p72
    %p74 = scmp.ne.s32.totalorder %s66, %s68
    %p75 = scmp.eq.s32.totalorder %s16, 1
    %p76 = por %p74, %p75
    %p77 = scmp.ne.s32.totalorder %s68, %s69
    %p78 = scmp.eq.s32.totalorder %s16, 0
    %p79 = por %p77, %p78
    %p80 = scmp.ne.s32.totalorder %s68, %s69
    %p81 = scmp.eq.s32.totalorder %s17, 1
    %p82 = por %p80, %p81
    %p84 = scmp.ne.s32.totalorder %s69, %s83
    %p85 = scmp.eq.s32.totalorder %s17, 0
    %p86 = por %p84, %p85
    %s88 = sadd.s32 %s87, 1
    %p91 = scmp.eq.s32.totalorder %s11, 1
    %p92 = scmp.ne.s32.totalorder %s87, %s89
    %p93 = scmp.eq.s32.totalorder %s11, 0
    %p94 = por %p92, %p93
    %p95 = scmp.ne.s32.totalorder %s87, %s89
    %p96 = scmp.eq.s32.totalorder %s16, 1
    %p97 = por %p95, %p96
    %p98 = scmp.ne.s32.totalorder %s89, %s90
    %p99 = scmp.eq.s32.totalorder %s16, 0
    %p100 = por %p98, %p99
    %p101 = scmp.ne.s32.totalorder %s89, %s90
    %p102 = scmp.eq.s32.totalorder %s17, 1
    %p103 = por %p101, %p102
    %p105 = scmp.ne.s32.totalorder %s90, %s104
    %p106 = scmp.eq.s32.totalorder %s17, 0
    %p107 = por %p105, %p106
    %s109 = sadd.s32 %s108, 1
    %p112 = scmp.eq.s32.totalorder %s11, 1
    %p113 = scmp.ne.s32.totalorder %s108, %s110
    %p114 = scmp.eq.s32.totalorder %s11, 0
    %p115 = por %p113, %p114
    %p116 = scmp.ne.s32.totalorder %s108, %s110
    %p117 = scmp.eq.s32.totalorder %s16, 1
    %p118 = por %p116, %p117
    %p119 = scmp.ne.s32.totalorder %s110, %s111
    %p120 = scmp.eq.s32.totalorder %s16, 0
    %p121 = por %p119, %p120
    %p122 = scmp.ne.s32.totalorder %s110, %s111
    %p123 = scmp.eq.s32.totalorder %s17, 1
    %p124 = por %p122, %p123
    %p126 = scmp.ne.s32.totalorder %s111, %s125
    %p127 = scmp.eq.s32.totalorder %s17, 0
    %p128 = por %p126, %p127
    %s129 = ssub.s32 %s11, %s18
    %p130 = scmp.eq.s32.totalorder %s129, 0
    %s132 = sadd.s32 %s131, 1
    %s133 = scalar_select %p130, %s131, %s132
    %p136 = pneg %p130
    %p137 = scmp.eq.s32.totalorder %s11, 1
    %p138 = por %p136, %p137
    %p139 = scmp.ne.s32.totalorder %s131, %s134
    %p140 = scmp.eq.s32.totalorder %s11, 0
    %p141 = por %p139, %p140
    %p142 = scmp.ne.s32.totalorder %s131, %s134
    %p143 = scmp.eq.s32.totalorder %s16, 1
    %p144 = por %p142, %p143
    %p145 = scmp.ne.s32.totalorder %s134, %s135
    %p146 = scmp.eq.s32.totalorder %s16, 0
    %p147 = por %p145, %p146
    %p148 = scmp.ne.s32.totalorder %s134, %s135
    %p149 = scmp.eq.s32.totalorder %s17, 1
    %p150 = por %p148, %p149
    %p152 = scmp.ne.s32.totalorder %s135, %s151
    %p153 = scmp.eq.s32.totalorder %s17, 0
    %p154 = por %p152, %p153
    %p155 = scmp.le.s32.totalorder 1, %s11
    %p156 = scmp.lt.s32.totalorder %s11, 3
    %p157 = pnand %p155, %p156
    %p158 = pneg %p157
    // Predicated region
    $region9: #{_lambda_.1} parent=5 // pred_check
      _
    $region10: #{_lambda_.1} parent=5 // pred_check_branch
      %160 = sbr.rel (%p157) target = $region12
    $region11: #{_lambda_.1} parent=5 // pred_region
      %s161 = ssub.s32 %s11, 1
      // Predicated region
      $region13: #{_lambda_.1} parent=11 // pred_check
        %p162 = pneg %p58
      $region14: #{_lambda_.1} parent=11 // pred_check_branch
        %164 = sbr.rel (%p162) target = $region16
      $region15: #{_lambda_.1} parent=11 // pred_region
        _
      $region16: #{_lambda_.1} parent=11 // pred_fallthru
        _
      // Predicated region
      $region17: #{_lambda_.1} parent=11 // pred_check
        %p165 = pneg %p79
      $region18: #{_lambda_.1} parent=11 // pred_check_branch
        %167 = sbr.rel (%p165) target = $region20
      $region19: #{_lambda_.1} parent=11 // pred_region
        _
      $region20: #{_lambda_.1} parent=11 // pred_fallthru
        _
      // Predicated region
      $region21: #{_lambda_.1} parent=11 // pred_check
        %p168 = pneg %p100
      $region22: #{_lambda_.1} parent=11 // pred_check_branch
        %170 = sbr.rel (%p168) target = $region24
      $region23: #{_lambda_.1} parent=11 // pred_region
        _
      $region24: #{_lambda_.1} parent=11 // pred_fallthru
        _
      // Predicated region
      $region25: #{_lambda_.1} parent=11 // pred_check
        %p171 = pneg %p121
      $region26: #{_lambda_.1} parent=11 // pred_check_branch
        %173 = sbr.rel (%p171) target = $region28
      $region27: #{_lambda_.1} parent=11 // pred_region
        _
      $region28: #{_lambda_.1} parent=11 // pred_fallthru
        _
    $region12: #{_lambda_.1} parent=5 // pred_fallthru
      _
    %p174 = scmp.lt.s32.totalorder %s11, 2
    // Predicated region
    $region29: #{_lambda_.1} parent=5 // pred_check
      %p175 = pneg %p174
    $region30: #{_lambda_.1} parent=5 // pred_check_branch
      %177 = sbr.rel (%p175) target = $region32
    $region31: #{_lambda_.1} parent=5 // pred_region
      // Predicated region
      $region33: #{_lambda_.1} parent=31 // pred_check
        %p178 = pneg %p31
      $region34: #{_lambda_.1} parent=31 // pred_check_branch
        %180 = sbr.rel (%p178) target = $region36
      $region35: #{_lambda_.1} parent=31 // pred_region
        %s181 = smul.u32 4, %s11
        %p182 = scmp.lt.s32.totalorder %s181, 7
        %s183 = scalar_select %p182, %s181, 7
        %s184 = smul.addr %s183, 24
        %s185 = smul.addr %s184, 8
        %s186 = scalar_lea.vmem %s0, %s185
        %s187 = smul.u32 4, %s11
      $region36: #{_lambda_.1} parent=31 // pred_fallthru
        _
    $region32: #{_lambda_.1} parent=5 // pred_fallthru
      _
    %p188 = scmp.le.s32.totalorder 1, %s11
    %p189 = scmp.lt.s32.totalorder %s11, 3
    %p190 = pnand %p188, %p189
    %p191 = pneg %p190
    // Predicated region
    $region37: #{_lambda_.1} parent=5 // pred_check
      _
    $region38: #{_lambda_.1} parent=5 // pred_check_branch
      %193 = sbr.rel (%p190) target = $region40
    $region39: #{_lambda_.1} parent=5 // pred_region
      %s194 = ssub.s32 %s11, 1
      %s195 = smul.u32 4, %s16
      %p196 = scmp.lt.s32.totalorder %s195, 7
      %s197 = scalar_select %p196, %s195, 7
      %s198 = smul.addr %s197, 24
      %s199 = smul.addr %s198, 8
      %s200 = scalar_lea.vmem %s0, %s199
      %p201 = pneg %p37
      %p202 = pneg %p34
      %p203 = pneg %p58
      %p204 = pneg %p55
      %p205 = pneg %p79
      %p206 = pneg %p76
      %p207 = pneg %p100
      %p208 = pneg %p97
      %p209 = pneg %p121
      %p210 = pneg %p118
      %p211 = pneg %p147
      %p212 = pneg %p144
      %p213 = scmp.lt.s32.totalorder %s16, 1
      %s214 = scalar_select %p213, %s16, 1
      %s215 = smul.addr %s214, 8
      %s216 = smul.addr %s215, 8
      %s217 = scalar_lea.vmem %s5, %s216
      %s218 = smul.u32 4, %s16
      %p219 = scmp.lt.s32.totalorder %s218, 7
      %s220 = scalar_select %p219, %s218, 7
      %s221 = smul.addr %s220, 24
      %s222 = smul.addr %s221, 8
      %s223 = scalar_lea.vmem %s0, %s222
      %s224 = smul.u32 4, %s16
      %p225 = scmp.lt.s32.totalorder %s16, 1
      %s226 = scalar_select %p225, %s16, 1
      %s227 = smul.addr %s226, 8
      %s228 = smul.addr %s227, 8
      %s229 = scalar_lea.vmem %s5, %s228
      %v230 = vld [vmem:[%s223] sm:$0xff]
      %v231 = vld [vmem:[%s223 + $0x8] sm:$0x3]
      %v232 = vld [vmem:[%s223 + $0x10] sm:$0xff]
      %v233 = vld [vmem:[%s223 + $0x18] sm:$0x3]
      %v234 = vld [vmem:[%s223 + $0x20] sm:$0xff]
      %v235 = vld [vmem:[%s223 + $0x28] sm:$0x3]
      %v236 = vld [vmem:[%s223 + $0x30] sm:$0xff]
      %v237 = vld [vmem:[%s223 + $0x38] sm:$0x3]
      %v238 = vld [vmem:[%s223 + $0x40] sm:$0xff]
      %v239 = vld [vmem:[%s223 + $0x48] sm:$0x3]
      %v240 = vld [vmem:[%s223 + $0x50] sm:$0xff]
      %v241 = vld [vmem:[%s223 + $0x58] sm:$0x3]
      %v242 = vld [vmem:[%s223 + $0x60] sm:$0xff]
      %v243 = vld [vmem:[%s223 + $0x68] sm:$0x3]
      %v244 = vld [vmem:[%s223 + $0x70] sm:$0xff]
      %v245 = vld [vmem:[%s223 + $0x78] sm:$0x3]
      %v246 = vld [vmem:[%s223 + $0x80] sm:$0xff]
      %v247 = vld [vmem:[%s223 + $0x88] sm:$0x3]
      %v248 = vld [vmem:[%s223 + $0x90] sm:$0xff]
      %v249 = vld [vmem:[%s223 + $0x98] sm:$0x3]
      %v250 = vld [vmem:[%s223 + $0xa0] sm:$0xff]
      %v251 = vld [vmem:[%s223 + $0xa8] sm:$0x3]
      %v252 = vld [vmem:[%s223 + $0xb0] sm:$0xff]
      %v253 = vld [vmem:[%s223 + $0xb8] sm:$0x3]
      %v254 = vld [vmem:[%s223 + $0xc0] sm:$0xff]
      %v255 = vld [vmem:[%s223 + $0xc8] sm:$0x3]
      %v256 = vld [vmem:[%s223 + $0xd0] sm:$0xff]
      %v257 = vld [vmem:[%s223 + $0xd8] sm:$0x3]
      %v258 = vld [vmem:[%s223 + $0xe0] sm:$0xff]
      %v259 = vld [vmem:[%s223 + $0xe8] sm:$0x3]
      %v260 = vld [vmem:[%s223 + $0xf0] sm:$0xff]
      %v261 = vld [vmem:[%s223 + $0xf8] sm:$0x3]
      %v262 = vld [vmem:[%s223 + $0x100] sm:$0xff]
      %v263 = vld [vmem:[%s223 + $0x108] sm:$0x3]
      %v264 = vld [vmem:[%s223 + $0x110] sm:$0xff]
      %v265 = vld [vmem:[%s223 + $0x118] sm:$0x3]
      %v266 = vld [vmem:[%s223 + $0x120] sm:$0xff]
      %v267 = vld [vmem:[%s223 + $0x128] sm:$0x3]
      %v268 = vld [vmem:[%s223 + $0x130] sm:$0xff]
      %v269 = vld [vmem:[%s223 + $0x138] sm:$0x3]
      %v270 = vld [vmem:[%s223 + $0x140] sm:$0xff]
      %v271 = vld [vmem:[%s223 + $0x148] sm:$0x3]
      %v272 = vld [vmem:[%s223 + $0x150] sm:$0xff]
      %v273 = vld [vmem:[%s223 + $0x158] sm:$0x3]
      %v274 = vld [vmem:[%s223 + $0x160] sm:$0xff]
      %v275 = vld [vmem:[%s223 + $0x168] sm:$0x3]
      %v276 = vld [vmem:[%s223 + $0x170] sm:$0xff]
      %v277 = vld [vmem:[%s223 + $0x178] sm:$0x3]
      %v278 = vld [vmem:[%s223 + $0x180] sm:$0xff]
      %v279 = vld [vmem:[%s223 + $0x188] sm:$0x3]
      %v280 = vld [vmem:[%s223 + $0x190] sm:$0xff]
      %v281 = vld [vmem:[%s223 + $0x198] sm:$0x3]
      %v282 = vld [vmem:[%s223 + $0x1a0] sm:$0xff]
      %v283 = vld [vmem:[%s223 + $0x1a8] sm:$0x3]
      %v284 = vld [vmem:[%s223 + $0x1b0] sm:$0xff]
      %v285 = vld [vmem:[%s223 + $0x1b8] sm:$0x3]
      %v286 = vld [vmem:[%s223 + $0x1c0] sm:$0xff]
      %v287 = vld [vmem:[%s223 + $0x1c8] sm:$0x3]
      %v288 = vld [vmem:[%s223 + $0x1d0] sm:$0xff]
      %v289 = vld [vmem:[%s223 + $0x1d8] sm:$0x3]
      %v290 = vld [vmem:[%s223 + $0x1e0] sm:$0xff]
      %v291 = vld [vmem:[%s223 + $0x1e8] sm:$0x3]
      %v292 = vld [vmem:[%s223 + $0x1f0] sm:$0xff]
      %v293 = vld [vmem:[%s223 + $0x1f8] sm:$0x3]
      %v294 = vld [vmem:[%s223 + $0x200] sm:$0xff]
      %v295 = vld [vmem:[%s223 + $0x208] sm:$0x3]
      %v296 = vld [vmem:[%s223 + $0x210] sm:$0xff]
      %v297 = vld [vmem:[%s223 + $0x218] sm:$0x3]
      %v298 = vld [vmem:[%s223 + $0x220] sm:$0xff]
      %v299 = vld [vmem:[%s223 + $0x228] sm:$0x3]
      %v300 = vld [vmem:[%s223 + $0x230] sm:$0xff]
      %v301 = vld [vmem:[%s223 + $0x238] sm:$0x3]
      %v302 = vld [vmem:[%s223 + $0x240] sm:$0xff]
      %v303 = vld [vmem:[%s223 + $0x248] sm:$0x3]
      %v304 = vld [vmem:[%s223 + $0x250] sm:$0xff]
      %v305 = vld [vmem:[%s223 + $0x258] sm:$0x3]
      %v306 = vld [vmem:[%s223 + $0x260] sm:$0xff]
      %v307 = vld [vmem:[%s223 + $0x268] sm:$0x3]
      %v308 = vld [vmem:[%s223 + $0x270] sm:$0xff]
      %v309 = vld [vmem:[%s223 + $0x278] sm:$0x3]
      %v310 = vld [vmem:[%s223 + $0x280] sm:$0xff]
      %v311 = vld [vmem:[%s223 + $0x288] sm:$0x3]
      %v312 = vld [vmem:[%s223 + $0x290] sm:$0xff]
      %v313 = vld [vmem:[%s223 + $0x298] sm:$0x3]
      %v314 = vld [vmem:[%s223 + $0x2a0] sm:$0xff]
      %v315 = vld [vmem:[%s223 + $0x2a8] sm:$0x3]
      %v316 = vld [vmem:[%s223 + $0x2b0] sm:$0xff]
      %v317 = vld [vmem:[%s223 + $0x2b8] sm:$0x3]
      %v318 = vld [vmem:[%s223 + $0x2c0] sm:$0xff]
      %v319 = vld [vmem:[%s223 + $0x2c8] sm:$0x3]
      %v320 = vld [vmem:[%s223 + $0x2d0] sm:$0xff]
      %v321 = vld [vmem:[%s223 + $0x2d8] sm:$0x3]
      %v322 = vld [vmem:[%s223 + $0x2e0] sm:$0xff]
      %v323 = vld [vmem:[%s223 + $0x2e8] sm:$0x3]
      %v324 = vld [vmem:[%s223 + $0x2f0] sm:$0xff]
      %v325 = vld [vmem:[%s223 + $0x2f8] sm:$0x3]
      %v326 = vmax.f32 %v230, %v254
      %v327 = vmax.f32 %v231, %v255
      %v328 = vmax.f32 %v232, %v256
      %v329 = vmax.f32 %v233, %v257
      %v330 = vmax.f32 %v234, %v258
      %v331 = vmax.f32 %v235, %v259
      %v332 = vmax.f32 %v236, %v260
      %v333 = vmax.f32 %v237, %v261
      %v334 = vmax.f32 %v238, %v262
      %v335 = vmax.f32 %v239, %v263
      %v336 = vmax.f32 %v240, %v264
      %v337 = vmax.f32 %v241, %v265
      %v338 = vmax.f32 %v242, %v266
      %v339 = vmax.f32 %v243, %v267
      %v340 = vmax.f32 %v244, %v268
      %v341 = vmax.f32 %v245, %v269
      %v342 = vmax.f32 %v246, %v270
      %v343 = vmax.f32 %v247, %v271
      %v344 = vmax.f32 %v248, %v272
      %v345 = vmax.f32 %v249, %v273
      %v346 = vmax.f32 %v250, %v274
      %v347 = vmax.f32 %v251, %v275
      %v348 = vmax.f32 %v252, %v276
      %v349 = vmax.f32 %v253, %v277
      %v350 = vmax.f32 %v278, %v302
      %v351 = vmax.f32 %v279, %v303
      %v352 = vmax.f32 %v280, %v304
      %v353 = vmax.f32 %v281, %v305
      %v354 = vmax.f32 %v282, %v306
      %v355 = vmax.f32 %v283, %v307
      %v356 = vmax.f32 %v284, %v308
      %v357 = vmax.f32 %v285, %v309
      %v358 = vmax.f32 %v286, %v310
      %v359 = vmax.f32 %v287, %v311
      %v360 = vmax.f32 %v288, %v312
      %v361 = vmax.f32 %v289, %v313
      %v362 = vmax.f32 %v290, %v314
      %v363 = vmax.f32 %v291, %v315
      %v364 = vmax.f32 %v292, %v316
      %v365 = vmax.f32 %v293, %v317
      %v366 = vmax.f32 %v294, %v318
      %v367 = vmax.f32 %v295, %v319
      %v368 = vmax.f32 %v296, %v320
      %v369 = vmax.f32 %v297, %v321
      %v370 = vmax.f32 %v298, %v322
      %v371 = vmax.f32 %v299, %v323
      %v372 = vmax.f32 %v300, %v324
      %v373 = vmax.f32 %v301, %v325
      %v374 = vmax.f32 %v326, %v350
      %v375 = vmax.f32 %v327, %v351
      %v376 = vmax.f32 %v328, %v352
      %v377 = vmax.f32 %v329, %v353
      %v378 = vmax.f32 %v330, %v354
      %v379 = vmax.f32 %v331, %v355
      %v380 = vmax.f32 %v332, %v356
      %v381 = vmax.f32 %v333, %v357
      %v382 = vmax.f32 %v334, %v358
      %v383 = vmax.f32 %v335, %v359
      %v384 = vmax.f32 %v336, %v360
      %v385 = vmax.f32 %v337, %v361
      %v386 = vmax.f32 %v338, %v362
      %v387 = vmax.f32 %v339, %v363
      %v388 = vmax.f32 %v340, %v364
      %v389 = vmax.f32 %v341, %v365
      %v390 = vmax.f32 %v342, %v366
      %v391 = vmax.f32 %v343, %v367
      %v392 = vmax.f32 %v344, %v368
      %v393 = vmax.f32 %v345, %v369
      %v394 = vmax.f32 %v346, %v370
      %v395 = vmax.f32 %v347, %v371
      %v396 = vmax.f32 %v348, %v372
      %v397 = vmax.f32 %v349, %v373
      %vm418 = vcmask 1046528
      %v419 = vrot.slane %v374, 1
      %v420 = vrot.slane %v375, 1
      %v421 = vsel %vm418, %v419, %v420
      %v422 = vrot.slane %v376, 1
      %v423 = vrot.slane %v377, 1
      %v424 = vsel %vm418, %v422, %v423
      %v425 = vrot.slane %v378, 1
      %v426 = vrot.slane %v379, 1
      %v427 = vsel %vm418, %v425, %v426
      %v428 = vrot.slane %v380, 1
      %v429 = vrot.slane %v381, 1
      %v430 = vsel %vm418, %v428, %v429
      %v431 = vrot.slane %v382, 1
      %v432 = vrot.slane %v383, 1
      %v433 = vsel %vm418, %v431, %v432
      %v434 = vrot.slane %v384, 1
      %v435 = vrot.slane %v385, 1
      %v436 = vsel %vm418, %v434, %v435
      %v437 = vrot.slane %v386, 1
      %v438 = vrot.slane %v387, 1
      %v439 = vsel %vm418, %v437, %v438
      %v440 = vrot.slane %v388, 1
      %v441 = vrot.slane %v389, 1
      %v442 = vsel %vm418, %v440, %v441
      %v443 = vrot.slane %v390, 1
      %v444 = vrot.slane %v391, 1
      %v445 = vsel %vm418, %v443, %v444
      %v446 = vrot.slane %v392, 1
      %v447 = vrot.slane %v393, 1
      %v448 = vsel %vm418, %v446, %v447
      %vm459 = vcmask 1045504
      %v460 = vrot.slane %v374, 2
      %v461 = vrot.slane %v375, 2
      %v462 = vsel %vm459, %v460, %v461
      %v463 = vrot.slane %v376, 2
      %v464 = vrot.slane %v377, 2
      %v465 = vsel %vm459, %v463, %v464
      %v466 = vrot.slane %v378, 2
      %v467 = vrot.slane %v379, 2
      %v468 = vsel %vm459, %v466, %v467
      %v469 = vrot.slane %v380, 2
      %v470 = vrot.slane %v381, 2
      %v471 = vsel %vm459, %v469, %v470
      %v472 = vrot.slane %v382, 2
      %v473 = vrot.slane %v383, 2
      %v474 = vsel %vm459, %v472, %v473
      %v475 = vrot.slane %v384, 2
      %v476 = vrot.slane %v385, 2
      %v477 = vsel %vm459, %v475, %v476
      %v478 = vrot.slane %v386, 2
      %v479 = vrot.slane %v387, 2
      %v480 = vsel %vm459, %v478, %v479
      %v481 = vrot.slane %v388, 2
      %v482 = vrot.slane %v389, 2
      %v483 = vsel %vm459, %v481, %v482
      %v484 = vrot.slane %v390, 2
      %v485 = vrot.slane %v391, 2
      %v486 = vsel %vm459, %v484, %v485
      %v487 = vrot.slane %v392, 2
      %v488 = vrot.slane %v393, 2
      %v489 = vsel %vm459, %v487, %v488
      %v500 = vld [vmem:[%s1] sm:$0xff]
      %v501 = vld [vmem:[%s1 + $0x8] sm:$0xff]
      %v502 = vld [vmem:[%s1 + $0x10] sm:$0xff]
      %v503 = vld [vmem:[%s1 + $0x18] sm:$0xff]
      %v504 = vld [vmem:[%s1 + $0x20] sm:$0xff]
      %v505 = vld [vmem:[%s1 + $0x28] sm:$0xff]
      %v506 = vld [vmem:[%s1 + $0x30] sm:$0xff]
      %v507 = vld [vmem:[%s1 + $0x38] sm:$0xff]
      %v508 = vld [vmem:[%s1 + $0x40] sm:$0xff]
      %v509 = vld [vmem:[%s1 + $0x48] sm:$0xff]
      %v510 = vld [vmem:[%s1 + $0x50] sm:$0xff]
      %v511 = vld [vmem:[%s1 + $0x58] sm:$0xff]
      %v512 = vld [vmem:[%s1 + $0x60] sm:$0xff]
      %v513 = vld [vmem:[%s1 + $0x68] sm:$0xff]
      %v514 = vld [vmem:[%s1 + $0x70] sm:$0xff]
      %v515 = vld [vmem:[%s1 + $0x78] sm:$0xff]
      %v516 = vld [vmem:[%s1 + $0x80] sm:$0xff]
      %v517 = vld [vmem:[%s1 + $0x88] sm:$0xff]
      %v518 = vld [vmem:[%s1 + $0x90] sm:$0xff]
      %v519 = vld [vmem:[%s1 + $0x98] sm:$0xff]
      %v520 = vld [vmem:[%s1 + $0xa0] sm:$0xff]
      %v521 = vld [vmem:[%s1 + $0xa8] sm:$0xff]
      %v522 = vld [vmem:[%s1 + $0xb0] sm:$0xff]
      %v523 = vld [vmem:[%s1 + $0xb8] sm:$0xff]
      %v524 = vld [vmem:[%s1 + $0xc0] sm:$0xff]
      %v525 = vld [vmem:[%s1 + $0xc8] sm:$0xff]
      %v526 = vld [vmem:[%s1 + $0xd0] sm:$0xff]
      %v527 = vld [vmem:[%s1 + $0xd8] sm:$0xff]
      %v528 = vld [vmem:[%s1 + $0xe0] sm:$0xff]
      %v529 = vld [vmem:[%s1 + $0xe8] sm:$0xff]
      %v530 = vld [vmem:[%s1 + $0xf0] sm:$0xff]
      %v531 = vld [vmem:[%s1 + $0xf8] sm:$0xff]
      %v532 = vld [vmem:[%s1 + $0x100] sm:$0xff]
      %v533 = vld [vmem:[%s1 + $0x108] sm:$0xff]
      %v534 = vld [vmem:[%s1 + $0x110] sm:$0xff]
      %v535 = vld [vmem:[%s1 + $0x118] sm:$0xff]
      %v536 = vld [vmem:[%s1 + $0x120] sm:$0xff]
      %v537 = vld [vmem:[%s1 + $0x128] sm:$0xff]
      %v538 = vld [vmem:[%s1 + $0x130] sm:$0xff]
      %v539 = vld [vmem:[%s1 + $0x138] sm:$0xff]
      %v540 = vld [vmem:[%s1 + $0x140] sm:$0xff]
      %v541 = vld [vmem:[%s1 + $0x148] sm:$0xff]
      %v542 = vld [vmem:[%s1 + $0x150] sm:$0xff]
      %v543 = vld [vmem:[%s1 + $0x158] sm:$0xff]
      %v544 = vld [vmem:[%s1 + $0x160] sm:$0xff]
      %v545 = vld [vmem:[%s1 + $0x168] sm:$0xff]
      %v546 = vld [vmem:[%s1 + $0x170] sm:$0xff]
      %v547 = vld [vmem:[%s1 + $0x178] sm:$0xff]
      %v550 = vrot.slane %v394, 1
      %v551 = vrot.slane %v395, 1
      %v552 = vsel %vm418, %v550, %v551
      %v554 = vrot.slane %v394, 2
      %v555 = vrot.slane %v395, 2
      %v556 = vsel %vm459, %v554, %v555
      %v558 = vld [vmem:[%s1 + $0x180] sm:$0xff]
      %v559 = vld [vmem:[%s1 + $0x188] sm:$0xff]
      %v560 = vld [vmem:[%s1 + $0x190] sm:$0xff]
      %v561 = vld [vmem:[%s1 + $0x198] sm:$0xff]
      %v562 = vld [vmem:[%s1 + $0x1a0] sm:$0xff]
      %v563 = vld [vmem:[%s1 + $0x1a8] sm:$0xff]
      %v564 = vld [vmem:[%s1 + $0x1b0] sm:$0xff]
      %v565 = vld [vmem:[%s1 + $0x1b8] sm:$0xff]
      %v566 = vld [vmem:[%s1 + $0x1c0] sm:$0xff]
      %v567 = vld [vmem:[%s1 + $0x1c8] sm:$0xff]
      %v568 = vld [vmem:[%s1 + $0x1d0] sm:$0xff]
      %v569 = vld [vmem:[%s1 + $0x1d8] sm:$0xff]
      %v570 = vld [vmem:[%s1 + $0x1e0] sm:$0xff]
      %v571 = vld [vmem:[%s1 + $0x1e8] sm:$0xff]
      %v572 = vld [vmem:[%s1 + $0x1f0] sm:$0xff]
      %v573 = vld [vmem:[%s1 + $0x1f8] sm:$0xff]
      %v574 = vld [vmem:[%s1 + $0x200] sm:$0xff]
      %v575 = vld [vmem:[%s1 + $0x208] sm:$0xff]
      %v576 = vld [vmem:[%s1 + $0x210] sm:$0xff]
      %v577 = vld [vmem:[%s1 + $0x218] sm:$0xff]
      %v578 = vld [vmem:[%s1 + $0x220] sm:$0xff]
      %v579 = vld [vmem:[%s1 + $0x228] sm:$0xff]
      %v580 = vld [vmem:[%s1 + $0x230] sm:$0xff]
      %v581 = vld [vmem:[%s1 + $0x238] sm:$0xff]
      %v582 = vld [vmem:[%s1 + $0x240] sm:$0xff]
      %v583 = vld [vmem:[%s1 + $0x248] sm:$0xff]
      %v584 = vld [vmem:[%s1 + $0x250] sm:$0xff]
      %v585 = vld [vmem:[%s1 + $0x258] sm:$0xff]
      %v586 = vld [vmem:[%s1 + $0x260] sm:$0xff]
      %v587 = vld [vmem:[%s1 + $0x268] sm:$0xff]
      %v588 = vld [vmem:[%s1 + $0x270] sm:$0xff]
      %v589 = vld [vmem:[%s1 + $0x278] sm:$0xff]
      %v590 = vld [vmem:[%s1 + $0x280] sm:$0xff]
      %v591 = vld [vmem:[%s1 + $0x288] sm:$0xff]
      %v592 = vld [vmem:[%s1 + $0x290] sm:$0xff]
      %v593 = vld [vmem:[%s1 + $0x298] sm:$0xff]
      %v594 = vld [vmem:[%s1 + $0x2a0] sm:$0xff]
      %v595 = vld [vmem:[%s1 + $0x2a8] sm:$0xff]
      %v596 = vld [vmem:[%s1 + $0x2b0] sm:$0xff]
      %v597 = vld [vmem:[%s1 + $0x2b8] sm:$0xff]
      %v598 = vld [vmem:[%s1 + $0x2c0] sm:$0xff]
      %v599 = vld [vmem:[%s1 + $0x2c8] sm:$0xff]
      %v600 = vld [vmem:[%s1 + $0x2d0] sm:$0xff]
      %v601 = vld [vmem:[%s1 + $0x2d8] sm:$0xff]
      %v602 = vld [vmem:[%s1 + $0x2e0] sm:$0xff]
      %v603 = vld [vmem:[%s1 + $0x2e8] sm:$0xff]
      %v604 = vld [vmem:[%s1 + $0x2f0] sm:$0xff]
      %v605 = vld [vmem:[%s1 + $0x2f8] sm:$0xff]
      %606 = vmatprep.subr.mxu0 0.0
      %607 = vmatpush1.msra.mxu0 %v558
      %608 = vmatprep.subr.mxu0 0.0
      %609 = vmatpush1.msra.mxu0 %v559
      %610 = vmatprep.subr.mxu0 0.0
      %611 = vmatpush1.msra.mxu0 %v560
      %612 = vmatprep.subr.mxu0 0.0
      %613 = vmatpush1.msra.mxu0 %v561
      %614 = vmatprep.subr.mxu0 0.0
      %615 = vmatpush1.msra.mxu0 %v562
      %616 = vmatprep.subr.mxu0 0.0
      %617 = vmatpush1.msra.mxu0 %v563
      %618 = vmatprep.subr.mxu0 0.0
      %619 = vmatpush1.msra.mxu0 %v564
      %620 = vmatprep.subr.mxu0 0.0
      %621 = vmatpush1.msra.mxu0 %v565
      %622 = vmatprep.subr.mxu0 0.0
      %623 = vmatpush1.msra.mxu0 %v566
      %624 = vmatprep.subr.mxu0 0.0
      %625 = vmatpush1.msra.mxu0 %v567
      %626 = vmatprep.subr.mxu0 0.0
      %627 = vmatpush1.msra.mxu0 %v568
      %628 = vmatprep.subr.mxu0 0.0
      %629 = vmatpush1.msra.mxu0 %v569
      %630 = vmatprep.subr.mxu0 0.0
      %631 = vmatpush1.msra.mxu0 %v570
      %632 = vmatprep.subr.mxu0 0.0
      %633 = vmatpush1.msra.mxu0 %v571
      %634 = vmatprep.subr.mxu0 0.0
      %635 = vmatpush1.msra.mxu0 %v572
      %636 = vmatprep.subr.mxu0 0.0
      %637 = vmatpush1.msra.mxu0 %v573
      %638 = vmatprep.subr.mxu0 0.0
      %639 = vmatpush1.msra.mxu0 %v574
      %640 = vmatprep.subr.mxu0 0.0
      %641 = vmatpush1.msra.mxu0 %v575
      %642 = vmatprep.subr.mxu0 0.0
      %643 = vmatpush1.msra.mxu0 %v576
      %644 = vmatprep.subr.mxu0 0.0
      %645 = vmatpush1.msra.mxu0 %v577
      %646 = vmatprep.subr.mxu0 0.0
      %647 = vmatpush1.msra.mxu0 %v578
      %648 = vmatprep.subr.mxu0 0.0
      %649 = vmatpush1.msra.mxu0 %v579
      %650 = vmatprep.subr.mxu0 0.0
      %651 = vmatpush1.msra.mxu0 %v580
      %652 = vmatprep.subr.mxu0 0.0
      %653 = vmatpush1.msra.mxu0 %v581
      %654 = vmatprep.subr.mxu0 0.0
      %655 = vmatpush1.msra.mxu0 %v582
      %656 = vmatprep.subr.mxu0 0.0
      %657 = vmatpush1.msra.mxu0 %v583
      %658 = vmatprep.subr.mxu0 0.0
      %659 = vmatpush1.msra.mxu0 %v584
      %660 = vmatprep.subr.mxu0 0.0
      %661 = vmatpush1.msra.mxu0 %v585
      %662 = vmatprep.subr.mxu0 0.0
      %663 = vmatpush1.msra.mxu0 %v586
      %664 = vmatprep.subr.mxu0 0.0
      %665 = vmatpush1.msra.mxu0 %v587
      %666 = vmatprep.subr.mxu0 0.0
      %667 = vmatpush1.msra.mxu0 %v588
      %668 = vmatprep.subr.mxu0 0.0
      %669 = vmatpush1.msra.mxu0 %v589
      %670 = vmatprep.mubr.f32.mxu0 %v424
      %671 = vmatmul.mubr.f32.gmra.mrb[0].mxu0 %v376
      %v672 = vpop.f32.mrb[0].mxu0
      %v673 = vadd.f32 0.0, %v672
      %v674 = vpop.f32.mrb[0].mxu0
      %675 = vmatprep.mubr.f32.mxu0 %v427
      %676 = vmatmul.mubr.f32.gmra.mrb[0].mxu0 %v378
      %v677 = vpop.f32.mrb[0].mxu0
      %v678 = vadd.f32 0.0, %v677
      %v679 = vpop.f32.mrb[0].mxu0
      %680 = vmatprep.mubr.f32.mxu0 %v430
      %681 = vmatmul.mubr.f32.gmra.mrb[0].mxu0 %v380
      %v682 = vpop.f32.mrb[0].mxu0
      %v683 = vadd.f32 0.0, %v682
      %v684 = vpop.f32.mrb[0].mxu0
      %685 = vmatprep.mubr.f32.mxu0 %v433
      %686 = vmatmul.mubr.f32.gmra.mrb[0].mxu0 %v382
      %v687 = vpop.f32.mrb[0].mxu0
      %v688 = vadd.f32 0.0, %v687
      %v689 = vpop.f32.mrb[0].mxu0
      %690 = vmatprep.mubr.f32.mxu0 %v436
      %691 = vmatmul.mubr.f32.gmra.mrb[0].mxu0 %v384
      %v692 = vpop.f32.mrb[0].mxu0
      %v693 = vadd.f32 0.0, %v692
      %v694 = vpop.f32.mrb[0].mxu0
      %695 = vmatprep.mubr.f32.mxu0 %v439
      %696 = vmatmul.mubr.f32.gmra.mrb[0].mxu0 %v386
      %v697 = vpop.f32.mrb[0].mxu0
      %v698 = vadd.f32 0.0, %v697
      %v699 = vpop.f32.mrb[0].mxu0
      %700 = vmatprep.mubr.f32.mxu0 %v442
      %701 = vmatmul.mubr.f32.gmra.mrb[0].mxu0 %v388
      %v702 = vpop.f32.mrb[0].mxu0
      %v703 = vadd.f32 0.0, %v702
      %v704 = vpop.f32.mrb[0].mxu0
      %705 = vmatprep.mubr.f32.mxu0 %v445
      %706 = vmatmul.mubr.f32.gmra.mrb[0].mxu0 %v390
      %v707 = vpop.f32.mrb[0].mxu0
      %v708 = vadd.f32 0.0, %v707
      %v709 = vpop.f32.mrb[0].mxu0
      %710 = vmatprep.mubr.f32.mxu0 %v448
      %711 = vmatmul.mubr.f32.gmra.mrb[0].mxu0 %v392
      %v712 = vpop.f32.mrb[0].mxu0
      %v713 = vadd.f32 0.0, %v712
      %v714 = vpop.f32.mrb[0].mxu0
      %715 = vmatprep.mubr.f32.mxu0 %v552
      %716 = vmatmul.mubr.f32.gmra.mrb[0].mxu0 %v394
      %v717 = vpop.f32.mrb[0].mxu0
      %v718 = vadd.f32 0.0, %v717
      %v719 = vpop.f32.mrb[0].mxu0
      %720 = vdwg.mxu0
      %721 = vmatprep.subr.mxu0 0.0
      %722 = vmatpush1.msra.mxu0 %v590
      %723 = vmatprep.subr.mxu0 0.0
      %724 = vmatpush1.msra.mxu0 %v591
      %725 = vmatprep.subr.mxu0 0.0
      %726 = vmatpush1.msra.mxu0 %v592
      %727 = vmatprep.subr.mxu0 0.0
      %728 = vmatpush1.msra.mxu0 %v593
      %729 = vmatprep.subr.mxu0 0.0
      %730 = vmatpush1.msra.mxu0 %v594
      %731 = vmatprep.subr.mxu0 0.0
      %732 = vmatpush1.msra.mxu0 %v595
      %733 = vmatprep.subr.mxu0 0.0
      %734 = vmatpush1.msra.mxu0 %v596
      %735 = vmatprep.subr.mxu0 0.0
      %736 = vmatpush1.msra.mxu0 %v597
      %737 = vmatprep.subr.mxu0 0.0
      %738 = vmatpush1.msra.mxu0 %v598
      %739 = vmatprep.subr.mxu0 0.0
      %740 = vmatpush1.msra.mxu0 %v599
      %741 = vmatprep.subr.mxu0 0.0
      %742 = vmatpush1.msra.mxu0 %v600
      %743 = vmatprep.subr.mxu0 0.0
      %744 = vmatpush1.msra.mxu0 %v601
      %745 = vmatprep.subr.mxu0 0.0
      %746 = vmatpush1.msra.mxu0 %v602
      %747 = vmatprep.subr.mxu0 0.0
      %748 = vmatpush1.msra.mxu0 %v603
      %749 = vmatprep.subr.mxu0 0.0
      %750 = vmatpush1.msra.mxu0 %v604
      %751 = vmatprep.subr.mxu0 0.0
      %752 = vmatpush1.msra.mxu0 %v605
      %753 = vmatprep.subr.mxu0 0.0
      %754 = vmatpush1.msra.mxu0 0.0
      %755 = vmatprep.subr.mxu0 0.0
      %756 = vmatpush1.msra.mxu0 0.0
      %757 = vmatprep.subr.mxu0 0.0
      %758 = vmatpush1.msra.mxu0 0.0
      %759 = vmatprep.subr.mxu0 0.0
      %760 = vmatpush1.msra.mxu0 0.0
      %761 = vmatprep.subr.mxu0 0.0
      %762 = vmatpush1.msra.mxu0 0.0
      %763 = vmatprep.subr.mxu0 0.0
      %764 = vmatpush1.msra.mxu0 0.0
      %765 = vmatprep.subr.mxu0 0.0
      %766 = vmatpush1.msra.mxu0 0.0
      %767 = vmatprep.subr.mxu0 0.0
      %768 = vmatpush1.msra.mxu0 0.0
      %769 = vmatprep.subr.mxu0 0.0
      %770 = vmatpush1.msra.mxu0 0.0
      %771 = vmatprep.subr.mxu0 0.0
      %772 = vmatpush1.msra.mxu0 0.0
      %773 = vmatprep.subr.mxu0 0.0
      %774 = vmatpush1.msra.mxu0 0.0
      %775 = vmatprep.subr.mxu0 0.0
      %776 = vmatpush1.msra.mxu0 0.0
      %777 = vmatprep.subr.mxu0 0.0
      %778 = vmatpush1.msra.mxu0 0.0
      %779 = vmatprep.subr.mxu0 0.0
      %780 = vmatpush1.msra.mxu0 0.0
      %781 = vmatprep.subr.mxu0 0.0
      %782 = vmatpush1.msra.mxu0 0.0
      %783 = vmatprep.subr.mxu0 0.0
      %784 = vmatpush1.msra.mxu0 0.0
      %785 = vmatprep.mubr.f32.mxu0 0.0
      %786 = vmatmul.mubr.f32.gmra.mrb[0].mxu0 %v465
      %v787 = vpop.f32.mrb[0].mxu0
      %v788 = vadd.f32 %v673, %v787
      %v789 = vpop.f32.mrb[0].mxu0
      %790 = vmatprep.mubr.f32.mxu0 0.0
      %791 = vmatmul.mubr.f32.gmra.mrb[0].mxu0 %v468
      %v792 = vpop.f32.mrb[0].mxu0
      %v793 = vadd.f32 %v678, %v792
      %v794 = vpop.f32.mrb[0].mxu0
      %795 = vmatprep.mubr.f32.mxu0 0.0
      %796 = vmatmul.mubr.f32.gmra.mrb[0].mxu0 %v471
      %v797 = vpop.f32.mrb[0].mxu0
      %v798 = vadd.f32 %v683, %v797
      %v799 = vpop.f32.mrb[0].mxu0
      %800 = vmatprep.mubr.f32.mxu0 0.0
      %801 = vmatmul.mubr.f32.gmra.mrb[0].mxu0 %v474
      %v802 = vpop.f32.mrb[0].mxu0
      %v803 = vadd.f32 %v688, %v802
      %v804 = vpop.f32.mrb[0].mxu0
      %805 = vmatprep.mubr.f32.mxu0 0.0
      %806 = vmatmul.mubr.f32.gmra.mrb[0].mxu0 %v477
      %v807 = vpop.f32.mrb[0].mxu0
      %v808 = vadd.f32 %v693, %v807
      %v809 = vpop.f32.mrb[0].mxu0
      %810 = vmatprep.mubr.f32.mxu0 0.0
      %811 = vmatmul.mubr.f32.gmra.mrb[0].mxu0 %v480
      %v812 = vpop.f32.mrb[0].mxu0
      %v813 = vadd.f32 %v698, %v812
      %v814 = vpop.f32.mrb[0].mxu0
      %815 = vmatprep.mubr.f32.mxu0 0.0
      %816 = vmatmul.mubr.f32.gmra.mrb[0].mxu0 %v483
      %v817 = vpop.f32.mrb[0].mxu0
      %v818 = vadd.f32 %v703, %v817
      %v819 = vpop.f32.mrb[0].mxu0
      %820 = vmatprep.mubr.f32.mxu0 0.0
      %821 = vmatmul.mubr.f32.gmra.mrb[0].mxu0 %v486
      %v822 = vpop.f32.mrb[0].mxu0
      %v823 = vadd.f32 %v708, %v822
      %v824 = vpop.f32.mrb[0].mxu0
      %825 = vmatprep.mubr.f32.mxu0 0.0
      %826 = vmatmul.mubr.f32.gmra.mrb[0].mxu0 %v489
      %v827 = vpop.f32.mrb[0].mxu0
      %v828 = vadd.f32 %v713, %v827
      %v829 = vpop.f32.mrb[0].mxu0
      %830 = vmatprep.mubr.f32.mxu0 0.0
      %831 = vmatmul.mubr.f32.gmra.mrb[0].mxu0 %v556
      %v832 = vpop.f32.mrb[0].mxu0
      %v833 = vadd.f32 %v718, %v832
      %v834 = vpop.f32.mrb[0].mxu0
      %835 = vdwg.mxu0
      %836 = vmatprep.subr.mxu0 0.0
      %837 = vmatpush1.msra.mxu0 %v500
      %838 = vmatprep.subr.mxu0 0.0
      %839 = vmatpush1.msra.mxu0 %v501
      %840 = vmatprep.subr.mxu0 0.0
      %841 = vmatpush1.msra.mxu0 %v502
      %842 = vmatprep.subr.mxu0 0.0
      %843 = vmatpush1.msra.mxu0 %v503
      %844 = vmatprep.subr.mxu0 0.0
      %845 = vmatpush1.msra.mxu0 %v504
      %846 = vmatprep.subr.mxu0 0.0
      %847 = vmatpush1.msra.mxu0 %v505
      %848 = vmatprep.subr.mxu0 0.0
      %849 = vmatpush1.msra.mxu0 %v506
      %850 = vmatprep.subr.mxu0 0.0
      %851 = vmatpush1.msra.mxu0 %v507
      %852 = vmatprep.subr.mxu0 0.0
      %853 = vmatpush1.msra.mxu0 %v508
      %854 = vmatprep.subr.mxu0 0.0
      %855 = vmatpush1.msra.mxu0 %v509
      %856 = vmatprep.subr.mxu0 0.0
      %857 = vmatpush1.msra.mxu0 %v510
      %858 = vmatprep.subr.mxu0 0.0
      %859 = vmatpush1.msra.mxu0 %v511
      %860 = vmatprep.subr.mxu0 0.0
      %861 = vmatpush1.msra.mxu0 %v512
      %862 = vmatprep.subr.mxu0 0.0
      %863 = vmatpush1.msra.mxu0 %v513
      %864 = vmatprep.subr.mxu0 0.0
      %865 = vmatpush1.msra.mxu0 %v514
      %866 = vmatprep.subr.mxu0 0.0
      %867 = vmatpush1.msra.mxu0 %v515
      %868 = vmatprep.subr.mxu0 0.0
      %869 = vmatpush1.msra.mxu0 %v516
      %870 = vmatprep.subr.mxu0 0.0
      %871 = vmatpush1.msra.mxu0 %v517
      %872 = vmatprep.subr.mxu0 0.0
      %873 = vmatpush1.msra.mxu0 %v518
      %874 = vmatprep.subr.mxu0 0.0
      %875 = vmatpush1.msra.mxu0 %v519
      %876 = vmatprep.subr.mxu0 0.0
      %877 = vmatpush1.msra.mxu0 %v520
      %878 = vmatprep.subr.mxu0 0.0
      %879 = vmatpush1.msra.mxu0 %v521
      %880 = vmatprep.subr.mxu0 0.0
      %881 = vmatpush1.msra.mxu0 %v522
      %882 = vmatprep.subr.mxu0 0.0
      %883 = vmatpush1.msra.mxu0 %v523
      %884 = vmatprep.subr.mxu0 0.0
      %885 = vmatpush1.msra.mxu0 %v524
      %886 = vmatprep.subr.mxu0 0.0
      %887 = vmatpush1.msra.mxu0 %v525
      %888 = vmatprep.subr.mxu0 0.0
      %889 = vmatpush1.msra.mxu0 %v526
      %890 = vmatprep.subr.mxu0 0.0
      %891 = vmatpush1.msra.mxu0 %v527
      %892 = vmatprep.subr.mxu0 0.0
      %893 = vmatpush1.msra.mxu0 %v528
      %894 = vmatprep.subr.mxu0 0.0
      %895 = vmatpush1.msra.mxu0 %v529
      %896 = vmatprep.subr.mxu0 0.0
      %897 = vmatpush1.msra.mxu0 %v530
      %898 = vmatprep.subr.mxu0 0.0
      %899 = vmatpush1.msra.mxu0 %v531
      %900 = vmatprep.mubr.f32.mxu0 %v421
      %901 = vmatmul.mubr.f32.gmra.mrb[0].mxu0 %v374
      %v902 = vpop.f32.mrb[0].mxu0
      %v903 = vadd.f32 %v788, %v902
      %v904 = vpop.f32.mrb[0].mxu0
      %905 = vmatprep.mubr.f32.mxu0 %v424
      %906 = vmatmul.mubr.f32.gmra.mrb[0].mxu0 %v376
      %v907 = vpop.f32.mrb[0].mxu0
      %v908 = vadd.f32 %v793, %v907
      %v909 = vpop.f32.mrb[0].mxu0
      %910 = vmatprep.mubr.f32.mxu0 %v427
      %911 = vmatmul.mubr.f32.gmra.mrb[0].mxu0 %v378
      %v912 = vpop.f32.mrb[0].mxu0
      %v913 = vadd.f32 %v798, %v912
      %v914 = vpop.f32.mrb[0].mxu0
      %915 = vmatprep.mubr.f32.mxu0 %v430
      %916 = vmatmul.mubr.f32.gmra.mrb[0].mxu0 %v380
      %v917 = vpop.f32.mrb[0].mxu0
      %v918 = vadd.f32 %v803, %v917
      %v919 = vpop.f32.mrb[0].mxu0
      %920 = vmatprep.mubr.f32.mxu0 %v433
      %921 = vmatmul.mubr.f32.gmra.mrb[0].mxu0 %v382
      %v922 = vpop.f32.mrb[0].mxu0
      %v923 = vadd.f32 %v808, %v922
      %v924 = vpop.f32.mrb[0].mxu0
      %925 = vmatprep.mubr.f32.mxu0 %v436
      %926 = vmatmul.mubr.f32.gmra.mrb[0].mxu0 %v384
      %v927 = vpop.f32.mrb[0].mxu0
      %v928 = vadd.f32 %v813, %v927
      %v929 = vpop.f32.mrb[0].mxu0
      %930 = vmatprep.mubr.f32.mxu0 %v439
      %931 = vmatmul.mubr.f32.gmra.mrb[0].mxu0 %v386
      %v932 = vpop.f32.mrb[0].mxu0
      %v933 = vadd.f32 %v818, %v932
      %v934 = vpop.f32.mrb[0].mxu0
      %935 = vmatprep.mubr.f32.mxu0 %v442
      %936 = vmatmul.mubr.f32.gmra.mrb[0].mxu0 %v388
      %v937 = vpop.f32.mrb[0].mxu0
      %v938 = vadd.f32 %v823, %v937
      %v939 = vpop.f32.mrb[0].mxu0
      %940 = vmatprep.mubr.f32.mxu0 %v445
      %941 = vmatmul.mubr.f32.gmra.mrb[0].mxu0 %v390
      %v942 = vpop.f32.mrb[0].mxu0
      %v943 = vadd.f32 %v828, %v942
      %v944 = vpop.f32.mrb[0].mxu0
      %945 = vmatprep.mubr.f32.mxu0 %v448
      %946 = vmatmul.mubr.f32.gmra.mrb[0].mxu0 %v392
      %v947 = vpop.f32.mrb[0].mxu0
      %v948 = vadd.f32 %v833, %v947
      %v949 = vpop.f32.mrb[0].mxu0
      %950 = vdwg.mxu0
      %951 = vmatprep.subr.mxu0 0.0
      %952 = vmatpush1.msra.mxu0 %v532
      %953 = vmatprep.subr.mxu0 0.0
      %954 = vmatpush1.msra.mxu0 %v533
      %955 = vmatprep.subr.mxu0 0.0
      %956 = vmatpush1.msra.mxu0 %v534
      %957 = vmatprep.subr.mxu0 0.0
      %958 = vmatpush1.msra.mxu0 %v535
      %959 = vmatprep.subr.mxu0 0.0
      %960 = vmatpush1.msra.mxu0 %v536
      %961 = vmatprep.subr.mxu0 0.0
      %962 = vmatpush1.msra.mxu0 %v537
      %963 = vmatprep.subr.mxu0 0.0
      %964 = vmatpush1.msra.mxu0 %v538
      %965 = vmatprep.subr.mxu0 0.0
      %966 = vmatpush1.msra.mxu0 %v539
      %967 = vmatprep.subr.mxu0 0.0
      %968 = vmatpush1.msra.mxu0 %v540
      %969 = vmatprep.subr.mxu0 0.0
      %970 = vmatpush1.msra.mxu0 %v541
      %971 = vmatprep.subr.mxu0 0.0
      %972 = vmatpush1.msra.mxu0 %v542
      %973 = vmatprep.subr.mxu0 0.0
      %974 = vmatpush1.msra.mxu0 %v543
      %975 = vmatprep.subr.mxu0 0.0
      %976 = vmatpush1.msra.mxu0 %v544
      %977 = vmatprep.subr.mxu0 0.0
      %978 = vmatpush1.msra.mxu0 %v545
      %979 = vmatprep.subr.mxu0 0.0
      %980 = vmatpush1.msra.mxu0 %v546
      %981 = vmatprep.subr.mxu0 0.0
      %982 = vmatpush1.msra.mxu0 %v547
      %983 = vmatprep.subr.mxu0 0.0
      %984 = vmatpush1.msra.mxu0 0.0
      %985 = vmatprep.subr.mxu0 0.0
      %986 = vmatpush1.msra.mxu0 0.0
      %987 = vmatprep.subr.mxu0 0.0
      %988 = vmatpush1.msra.mxu0 0.0
      %989 = vmatprep.subr.mxu0 0.0
      %990 = vmatpush1.msra.mxu0 0.0
      %991 = vmatprep.subr.mxu0 0.0
      %992 = vmatpush1.msra.mxu0 0.0
      %993 = vmatprep.subr.mxu0 0.0
      %994 = vmatpush1.msra.mxu0 0.0
      %995 = vmatprep.subr.mxu0 0.0
      %996 = vmatpush1.msra.mxu0 0.0
      %997 = vmatprep.subr.mxu0 0.0
      %998 = vmatpush1.msra.mxu0 0.0
      %999 = vmatprep.subr.mxu0 0.0
      %1000 = vmatpush1.msra.mxu0 0.0
      %1001 = vmatprep.subr.mxu0 0.0
      %1002 = vmatpush1.msra.mxu0 0.0
      %1003 = vmatprep.subr.mxu0 0.0
      %1004 = vmatpush1.msra.mxu0 0.0
      %1005 = vmatprep.subr.mxu0 0.0
      %1006 = vmatpush1.msra.mxu0 0.0
      %1007 = vmatprep.subr.mxu0 0.0
      %1008 = vmatpush1.msra.mxu0 0.0
      %1009 = vmatprep.subr.mxu0 0.0
      %1010 = vmatpush1.msra.mxu0 0.0
      %1011 = vmatprep.subr.mxu0 0.0
      %1012 = vmatpush1.msra.mxu0 0.0
      %1013 = vmatprep.subr.mxu0 0.0
      %1014 = vmatpush1.msra.mxu0 0.0
      %1015 = vmatprep.mubr.f32.mxu0 0.0
      %1016 = vmatmul.mubr.f32.gmra.mrb[0].mxu0 %v462
      %v1017 = vpop.f32.mrb[0].mxu0
      %v1018 = vadd.f32 %v903, %v1017
      %v1019 = vpop.f32.mrb[0].mxu0
      %1020 = vmatprep.mubr.f32.mxu0 0.0
      %1021 = vmatmul.mubr.f32.gmra.mrb[0].mxu0 %v465
      %v1022 = vpop.f32.mrb[0].mxu0
      %v1023 = vadd.f32 %v908, %v1022
      %v1024 = vpop.f32.mrb[0].mxu0
      %1025 = vmatprep.mubr.f32.mxu0 0.0
      %1026 = vmatmul.mubr.f32.gmra.mrb[0].mxu0 %v468
      %v1027 = vpop.f32.mrb[0].mxu0
      %v1028 = vadd.f32 %v913, %v1027
      %v1029 = vpop.f32.mrb[0].mxu0
      %1030 = vmatprep.mubr.f32.mxu0 0.0
      %1031 = vmatmul.mubr.f32.gmra.mrb[0].mxu0 %v471
      %v1032 = vpop.f32.mrb[0].mxu0
      %v1033 = vadd.f32 %v918, %v1032
      %v1034 = vpop.f32.mrb[0].mxu0
      %1035 = vmatprep.mubr.f32.mxu0 0.0
      %1036 = vmatmul.mubr.f32.gmra.mrb[0].mxu0 %v474
      %v1037 = vpop.f32.mrb[0].mxu0
      %v1038 = vadd.f32 %v923, %v1037
      %v1039 = vpop.f32.mrb[0].mxu0
      %1040 = vmatprep.mubr.f32.mxu0 0.0
      %1041 = vmatmul.mubr.f32.gmra.mrb[0].mxu0 %v477
      %v1042 = vpop.f32.mrb[0].mxu0
      %v1043 = vadd.f32 %v928, %v1042
      %v1044 = vpop.f32.mrb[0].mxu0
      %1045 = vmatprep.mubr.f32.mxu0 0.0
      %1046 = vmatmul.mubr.f32.gmra.mrb[0].mxu0 %v480
      %v1047 = vpop.f32.mrb[0].mxu0
      %v1048 = vadd.f32 %v933, %v1047
      %v1049 = vpop.f32.mrb[0].mxu0
      %1050 = vmatprep.mubr.f32.mxu0 0.0
      %1051 = vmatmul.mubr.f32.gmra.mrb[0].mxu0 %v483
      %v1052 = vpop.f32.mrb[0].mxu0
      %v1053 = vadd.f32 %v938, %v1052
      %v1054 = vpop.f32.mrb[0].mxu0
      %1055 = vmatprep.mubr.f32.mxu0 0.0
      %1056 = vmatmul.mubr.f32.gmra.mrb[0].mxu0 %v486
      %v1057 = vpop.f32.mrb[0].mxu0
      %v1058 = vadd.f32 %v943, %v1057
      %v1059 = vpop.f32.mrb[0].mxu0
      %1060 = vmatprep.mubr.f32.mxu0 0.0
      %1061 = vmatmul.mubr.f32.gmra.mrb[0].mxu0 %v489
      %v1062 = vpop.f32.mrb[0].mxu0
      %v1063 = vadd.f32 %v948, %v1062
      %v1064 = vpop.f32.mrb[0].mxu0
      %1065 = vdwg.mxu0
      %v1068 = vrot.slane %v396, 1
      %v1069 = vrot.slane %v397, 1
      %v1070 = vsel %vm418, %v1068, %v1069
      %v1072 = vrot.slane %v396, 2
      %v1073 = vrot.slane %v397, 2
      %v1074 = vsel %vm459, %v1072, %v1073
      %v1076 = vld [vmem:[%s1 + $0x300] sm:$0xff]
      %v1077 = vld [vmem:[%s1 + $0x308] sm:$0xff]
      %v1078 = vld [vmem:[%s1 + $0x310] sm:$0xff]
      %v1079 = vld [vmem:[%s1 + $0x318] sm:$0xff]
      %v1080 = vld [vmem:[%s1 + $0x320] sm:$0xff]
      %v1081 = vld [vmem:[%s1 + $0x328] sm:$0xff]
      %v1082 = vld [vmem:[%s1 + $0x330] sm:$0xff]
      %v1083 = vld [vmem:[%s1 + $0x338] sm:$0xff]
      %v1084 = vld [vmem:[%s1 + $0x340] sm:$0xff]
      %v1085 = vld [vmem:[%s1 + $0x348] sm:$0xff]
      %v1086 = vld [vmem:[%s1 + $0x350] sm:$0xff]
      %v1087 = vld [vmem:[%s1 + $0x358] sm:$0xff]
      %v1088 = vld [vmem:[%s1 + $0x360] sm:$0xff]
      %v1089 = vld [vmem:[%s1 + $0x368] sm:$0xff]
      %v1090 = vld [vmem:[%s1 + $0x370] sm:$0xff]
      %v1091 = vld [vmem:[%s1 + $0x378] sm:$0xff]
      %v1092 = vld [vmem:[%s1 + $0x380] sm:$0xff]
      %v1093 = vld [vmem:[%s1 + $0x388] sm:$0xff]
      %v1094 = vld [vmem:[%s1 + $0x390] sm:$0xff]
      %v1095 = vld [vmem:[%s1 + $0x398] sm:$0xff]
      %v1096 = vld [vmem:[%s1 + $0x3a0] sm:$0xff]
      %v1097 = vld [vmem:[%s1 + $0x3a8] sm:$0xff]
      %v1098 = vld [vmem:[%s1 + $0x3b0] sm:$0xff]
      %v1099 = vld [vmem:[%s1 + $0x3b8] sm:$0xff]
      %v1100 = vld [vmem:[%s1 + $0x3c0] sm:$0xff]
      %v1101 = vld [vmem:[%s1 + $0x3c8] sm:$0xff]
      %v1102 = vld [vmem:[%s1 + $0x3d0] sm:$0xff]
      %v1103 = vld [vmem:[%s1 + $0x3d8] sm:$0xff]
      %v1104 = vld [vmem:[%s1 + $0x3e0] sm:$0xff]
      %v1105 = vld [vmem:[%s1 + $0x3e8] sm:$0xff]
      %v1106 = vld [vmem:[%s1 + $0x3f0] sm:$0xff]
      %v1107 = vld [vmem:[%s1 + $0x3f8] sm:$0xff]
      %v1108 = vld [vmem:[%s1 + $0x400] sm:$0xff]
      %v1109 = vld [vmem:[%s1 + $0x408] sm:$0xff]
      %v1110 = vld [vmem:[%s1 + $0x410] sm:$0xff]
      %v1111 = vld [vmem:[%s1 + $0x418] sm:$0xff]
      %v1112 = vld [vmem:[%s1 + $0x420] sm:$0xff]
      %v1113 = vld [vmem:[%s1 + $0x428] sm:$0xff]
      %v1114 = vld [vmem:[%s1 + $0x430] sm:$0xff]
      %v1115 = vld [vmem:[%s1 + $0x438] sm:$0xff]
      %v1116 = vld [vmem:[%s1 + $0x440] sm:$0xff]
      %v1117 = vld [vmem:[%s1 + $0x448] sm:$0xff]
      %v1118 = vld [vmem:[%s1 + $0x450] sm:$0xff]
      %v1119 = vld [vmem:[%s1 + $0x458] sm:$0xff]
      %v1120 = vld [vmem:[%s1 + $0x460] sm:$0xff]
      %v1121 = vld [vmem:[%s1 + $0x468] sm:$0xff]
      %v1122 = vld [vmem:[%s1 + $0x470] sm:$0xff]
      %v1123 = vld [vmem:[%s1 + $0x478] sm:$0xff]
      %1124 = vmatprep.subr.mxu0 0.0
      %1125 = vmatpush1.msra.mxu0 %v1076
      %1126 = vmatprep.subr.mxu0 0.0
      %1127 = vmatpush1.msra.mxu0 %v1077
      %1128 = vmatprep.subr.mxu0 0.0
      %1129 = vmatpush1.msra.mxu0 %v1078
      %1130 = vmatprep.subr.mxu0 0.0
      %1131 = vmatpush1.msra.mxu0 %v1079
      %1132 = vmatprep.subr.mxu0 0.0
      %1133 = vmatpush1.msra.mxu0 %v1080
      %1134 = vmatprep.subr.mxu0 0.0
      %1135 = vmatpush1.msra.mxu0 %v1081
      %1136 = vmatprep.subr.mxu0 0.0
      %1137 = vmatpush1.msra.mxu0 %v1082
      %1138 = vmatprep.subr.mxu0 0.0
      %1139 = vmatpush1.msra.mxu0 %v1083
      %1140 = vmatprep.subr.mxu0 0.0
      %1141 = vmatpush1.msra.mxu0 %v1084
      %1142 = vmatprep.subr.mxu0 0.0
      %1143 = vmatpush1.msra.mxu0 %v1085
      %1144 = vmatprep.subr.mxu0 0.0
      %1145 = vmatpush1.msra.mxu0 %v1086
      %1146 = vmatprep.subr.mxu0 0.0
      %1147 = vmatpush1.msra.mxu0 %v1087
      %1148 = vmatprep.subr.mxu0 0.0
      %1149 = vmatpush1.msra.mxu0 %v1088
      %1150 = vmatprep.subr.mxu0 0.0
      %1151 = vmatpush1.msra.mxu0 %v1089
      %1152 = vmatprep.subr.mxu0 0.0
      %1153 = vmatpush1.msra.mxu0 %v1090
      %1154 = vmatprep.subr.mxu0 0.0
      %1155 = vmatpush1.msra.mxu0 %v1091
      %1156 = vmatprep.subr.mxu0 0.0
      %1157 = vmatpush1.msra.mxu0 %v1092
      %1158 = vmatprep.subr.mxu0 0.0
      %1159 = vmatpush1.msra.mxu0 %v1093
      %1160 = vmatprep.subr.mxu0 0.0
      %1161 = vmatpush1.msra.mxu0 %v1094
      %1162 = vmatprep.subr.mxu0 0.0
      %1163 = vmatpush1.msra.mxu0 %v1095
      %1164 = vmatprep.subr.mxu0 0.0
      %1165 = vmatpush1.msra.mxu0 %v1096
      %1166 = vmatprep.subr.mxu0 0.0
      %1167 = vmatpush1.msra.mxu0 %v1097
      %1168 = vmatprep.subr.mxu0 0.0
      %1169 = vmatpush1.msra.mxu0 %v1098
      %1170 = vmatprep.subr.mxu0 0.0
      %1171 = vmatpush1.msra.mxu0 %v1099
      %1172 = vmatprep.subr.mxu0 0.0
      %1173 = vmatpush1.msra.mxu0 %v1100
      %1174 = vmatprep.subr.mxu0 0.0
      %1175 = vmatpush1.msra.mxu0 %v1101
      %1176 = vmatprep.subr.mxu0 0.0
      %1177 = vmatpush1.msra.mxu0 %v1102
      %1178 = vmatprep.subr.mxu0 0.0
      %1179 = vmatpush1.msra.mxu0 %v1103
      %1180 = vmatprep.subr.mxu0 0.0
      %1181 = vmatpush1.msra.mxu0 %v1104
      %1182 = vmatprep.subr.mxu0 0.0
      %1183 = vmatpush1.msra.mxu0 %v1105
      %1184 = vmatprep.subr.mxu0 0.0
      %1185 = vmatpush1.msra.mxu0 %v1106
      %1186 = vmatprep.subr.mxu0 0.0
      %1187 = vmatpush1.msra.mxu0 %v1107
      %1188 = vmatprep.mubr.f32.mxu0 %v427
      %1189 = vmatmul.mubr.f32.gmra.mrb[0].mxu0 %v378
      %v1190 = vpop.f32.mrb[0].mxu0
      %v1191 = vadd.f32 0.0, %v1190
      %v1192 = vpop.f32.mrb[0].mxu0
      %1193 = vmatprep.mubr.f32.mxu0 %v430
      %1194 = vmatmul.mubr.f32.gmra.mrb[0].mxu0 %v380
      %v1195 = vpop.f32.mrb[0].mxu0
      %v1196 = vadd.f32 0.0, %v1195
      %v1197 = vpop.f32.mrb[0].mxu0
      %1198 = vmatprep.mubr.f32.mxu0 %v433
      %1199 = vmatmul.mubr.f32.gmra.mrb[0].mxu0 %v382
      %v1200 = vpop.f32.mrb[0].mxu0
      %v1201 = vadd.f32 0.0, %v1200
      %v1202 = vpop.f32.mrb[0].mxu0
      %1203 = vmatprep.mubr.f32.mxu0 %v436
      %1204 = vmatmul.mubr.f32.gmra.mrb[0].mxu0 %v384
      %v1205 = vpop.f32.mrb[0].mxu0
      %v1206 = vadd.f32 0.0, %v1205
      %v1207 = vpop.f32.mrb[0].mxu0
      %1208 = vmatprep.mubr.f32.mxu0 %v439
      %1209 = vmatmul.mubr.f32.gmra.mrb[0].mxu0 %v386
      %v1210 = vpop.f32.mrb[0].mxu0
      %v1211 = vadd.f32 0.0, %v1210
      %v1212 = vpop.f32.mrb[0].mxu0
      %1213 = vmatprep.mubr.f32.mxu0 %v442
      %1214 = vmatmul.mubr.f32.gmra.mrb[0].mxu0 %v388
      %v1215 = vpop.f32.mrb[0].mxu0
      %v1216 = vadd.f32 0.0, %v1215
      %v1217 = vpop.f32.mrb[0].mxu0
      %1218 = vmatprep.mubr.f32.mxu0 %v445
      %1219 = vmatmul.mubr.f32.gmra.mrb[0].mxu0 %v390
      %v1220 = vpop.f32.mrb[0].mxu0
      %v1221 = vadd.f32 0.0, %v1220
      %v1222 = vpop.f32.mrb[0].mxu0
      %1223 = vmatprep.mubr.f32.mxu0 %v448
      %1224 = vmatmul.mubr.f32.gmra.mrb[0].mxu0 %v392
      %v1225 = vpop.f32.mrb[0].mxu0
      %v1226 = vadd.f32 0.0, %v1225
      %v1227 = vpop.f32.mrb[0].mxu0
      %1228 = vmatprep.mubr.f32.mxu0 %v552
      %1229 = vmatmul.mubr.f32.gmra.mrb[0].mxu0 %v394
      %v1230 = vpop.f32.mrb[0].mxu0
      %v1231 = vadd.f32 0.0, %v1230
      %v1232 = vpop.f32.mrb[0].mxu0
      %1233 = vmatprep.mubr.f32.mxu0 %v1070
      %1234 = vmatmul.mubr.f32.gmra.mrb[0].mxu0 %v396
      %v1235 = vpop.f32.mrb[0].mxu0
      %v1236 = vadd.f32 0.0, %v1235
      %v1237 = vpop.f32.mrb[0].mxu0
      %1238 = vdwg.mxu0
      %1239 = vmatprep.subr.mxu0 0.0
      %1240 = vmatpush1.msra.mxu0 %v1108
      %1241 = vmatprep.subr.mxu0 0.0
      %1242 = vmatpush1.msra.mxu0 %v1109
      %1243 = vmatprep.subr.mxu0 0.0
      %1244 = vmatpush1.msra.mxu0 %v1110
      %1245 = vmatprep.subr.mxu0 0.0
      %1246 = vmatpush1.msra.mxu0 %v1111
      %1247 = vmatprep.subr.mxu0 0.0
      %1248 = vmatpush1.msra.mxu0 %v1112
      %1249 = vmatprep.subr.mxu0 0.0
      %1250 = vmatpush1.msra.mxu0 %v1113
      %1251 = vmatprep.subr.mxu0 0.0
      %1252 = vmatpush1.msra.mxu0 %v1114
      %1253 = vmatprep.subr.mxu0 0.0
      %1254 = vmatpush1.msra.mxu0 %v1115
      %1255 = vmatprep.subr.mxu0 0.0
      %1256 = vmatpush1.msra.mxu0 %v1116
      %1257 = vmatprep.subr.mxu0 0.0
      %1258 = vmatpush1.msra.mxu0 %v1117
      %1259 = vmatprep.subr.mxu0 0.0
      %1260 = vmatpush1.msra.mxu0 %v1118
      %1261 = vmatprep.subr.mxu0 0.0
      %1262 = vmatpush1.msra.mxu0 %v1119
      %1263 = vmatprep.subr.mxu0 0.0
      %1264 = vmatpush1.msra.mxu0 %v1120
      %1265 = vmatprep.subr.mxu0 0.0
      %1266 = vmatpush1.msra.mxu0 %v1121
      %1267 = vmatprep.subr.mxu0 0.0
      %1268 = vmatpush1.msra.mxu0 %v1122
      %1269 = vmatprep.subr.mxu0 0.0
      %1270 = vmatpush1.msra.mxu0 %v1123
      %1271 = vmatprep.subr.mxu0 0.0
      %1272 = vmatpush1.msra.mxu0 0.0
      %1273 = vmatprep.subr.mxu0 0.0
      %1274 = vmatpush1.msra.mxu0 0.0
      %1275 = vmatprep.subr.mxu0 0.0
      %1276 = vmatpush1.msra.mxu0 0.0
      %1277 = vmatprep.subr.mxu0 0.0
      %1278 = vmatpush1.msra.mxu0 0.0
      %1279 = vmatprep.subr.mxu0 0.0
      %1280 = vmatpush1.msra.mxu0 0.0
      %1281 = vmatprep.subr.mxu0 0.0
      %1282 = vmatpush1.msra.mxu0 0.0
      %1283 = vmatprep.subr.mxu0 0.0
      %1284 = vmatpush1.msra.mxu0 0.0
      %1285 = vmatprep.subr.mxu0 0.0
      %1286 = vmatpush1.msra.mxu0 0.0
      %1287 = vmatprep.subr.mxu0 0.0
      %1288 = vmatpush1.msra.mxu0 0.0
      %1289 = vmatprep.subr.mxu0 0.0
      %1290 = vmatpush1.msra.mxu0 0.0
      %1291 = vmatprep.subr.mxu0 0.0
      %1292 = vmatpush1.msra.mxu0 0.0
      %1293 = vmatprep.subr.mxu0 0.0
      %1294 = vmatpush1.msra.mxu0 0.0
      %1295 = vmatprep.subr.mxu0 0.0
      %1296 = vmatpush1.msra.mxu0 0.0
      %1297 = vmatprep.subr.mxu0 0.0
      %1298 = vmatpush1.msra.mxu0 0.0
      %1299 = vmatprep.subr.mxu0 0.0
      %1300 = vmatpush1.msra.mxu0 0.0
      %1301 = vmatprep.subr.mxu0 0.0
      %1302 = vmatpush1.msra.mxu0 0.0
      %1303 = vmatprep.mubr.f32.mxu0 0.0
      %1304 = vmatmul.mubr.f32.gmra.mrb[0].mxu0 %v468
      %v1305 = vpop.f32.mrb[0].mxu0
      %v1306 = vadd.f32 %v1191, %v1305
      %v1307 = vpop.f32.mrb[0].mxu0
      %1308 = vmatprep.mubr.f32.mxu0 0.0
      %1309 = vmatmul.mubr.f32.gmra.mrb[0].mxu0 %v471
      %v1310 = vpop.f32.mrb[0].mxu0
      %v1311 = vadd.f32 %v1196, %v1310
      %v1312 = vpop.f32.mrb[0].mxu0
      %1313 = vmatprep.mubr.f32.mxu0 0.0
      %1314 = vmatmul.mubr.f32.gmra.mrb[0].mxu0 %v474
      %v1315 = vpop.f32.mrb[0].mxu0
      %v1316 = vadd.f32 %v1201, %v1315
      %v1317 = vpop.f32.mrb[0].mxu0
      %1318 = vmatprep.mubr.f32.mxu0 0.0
      %1319 = vmatmul.mubr.f32.gmra.mrb[0].mxu0 %v477
      %v1320 = vpop.f32.mrb[0].mxu0
      %v1321 = vadd.f32 %v1206, %v1320
      %v1322 = vpop.f32.mrb[0].mxu0
      %1323 = vmatprep.mubr.f32.mxu0 0.0
      %1324 = vmatmul.mubr.f32.gmra.mrb[0].mxu0 %v480
      %v1325 = vpop.f32.mrb[0].mxu0
      %v1326 = vadd.f32 %v1211, %v1325
      %v1327 = vpop.f32.mrb[0].mxu0
      %1328 = vmatprep.mubr.f32.mxu0 0.0
      %1329 = vmatmul.mubr.f32.gmra.mrb[0].mxu0 %v483
      %v1330 = vpop.f32.mrb[0].mxu0
      %v1331 = vadd.f32 %v1216, %v1330
      %v1332 = vpop.f32.mrb[0].mxu0
      %1333 = vmatprep.mubr.f32.mxu0 0.0
      %1334 = vmatmul.mubr.f32.gmra.mrb[0].mxu0 %v486
      %v1335 = vpop.f32.mrb[0].mxu0
      %v1336 = vadd.f32 %v1221, %v1335
      %v1337 = vpop.f32.mrb[0].mxu0
      %1338 = vmatprep.mubr.f32.mxu0 0.0
      %1339 = vmatmul.mubr.f32.gmra.mrb[0].mxu0 %v489
      %v1340 = vpop.f32.mrb[0].mxu0
      %v1341 = vadd.f32 %v1226, %v1340
      %v1342 = vpop.f32.mrb[0].mxu0
      %1343 = vmatprep.mubr.f32.mxu0 0.0
      %1344 = vmatmul.mubr.f32.gmra.mrb[0].mxu0 %v556
      %v1345 = vpop.f32.mrb[0].mxu0
      %v1346 = vadd.f32 %v1231, %v1345
      %v1347 = vpop.f32.mrb[0].mxu0
      %1348 = vmatprep.mubr.f32.mxu0 0.0
      %1349 = vmatmul.mubr.f32.gmra.mrb[0].mxu0 %v1074
      %v1350 = vpop.f32.mrb[0].mxu0
      %v1351 = vadd.f32 %v1236, %v1350
      %v1352 = vpop.f32.mrb[0].mxu0
      %1353 = vdwg.mxu0
      %v1354 = vadd.f32 %v1018, %v1306
      %v1355 = vadd.f32 %v1023, %v1311
      %v1356 = vadd.f32 %v1028, %v1316
      %v1357 = vadd.f32 %v1033, %v1321
      %v1358 = vadd.f32 %v1038, %v1326
      %v1359 = vadd.f32 %v1043, %v1331
      %v1360 = vadd.f32 %v1048, %v1336
      %v1361 = vadd.f32 %v1053, %v1341
      %v1362 = vadd.f32 %v1058, %v1346
      %v1363 = vadd.f32 %v1063, %v1351
      %v1364 = vld [vmem:[%s2] sm:$0x1]
      %v1366 = vlaneseq
      %v1367 = vshrl.u32 %v1366, 7
      %v1368 = vsub.s32 0, %v1367
      %v1369 = vrot.slane %v1364, %v1368
      %v1371 = vadd.f32 %v1354, %v1369
      %v1372 = vadd.f32 %v1355, %v1369
      %v1373 = vadd.f32 %v1356, %v1369
      %v1374 = vadd.f32 %v1357, %v1369
      %v1375 = vadd.f32 %v1358, %v1369
      %v1376 = vadd.f32 %v1359, %v1369
      %v1377 = vadd.f32 %v1360, %v1369
      %v1378 = vadd.f32 %v1361, %v1369
      %v1379 = vadd.f32 %v1362, %v1369
      %v1380 = vadd.f32 %v1363, %v1369
      %v1381 = vmax.f32 %v1371, 0.0
      %v1382 = vmax.f32 %v1372, 0.0
      %v1383 = vmax.f32 %v1373, 0.0
      %v1384 = vmax.f32 %v1374, 0.0
      %v1385 = vmax.f32 %v1375, 0.0
      %v1386 = vmax.f32 %v1376, 0.0
      %v1387 = vmax.f32 %v1377, 0.0
      %v1388 = vmax.f32 %v1378, 0.0
      %v1389 = vmax.f32 %v1379, 0.0
      %v1390 = vmax.f32 %v1380, 0.0
      %v1391 = vlaneseq
      %v1392 = vshrl.u32 %v1391, 7
      %v1393 = vadd.s32 %v1392, 8
      %v1394 = vadd.s32 %v1392, 4294967295
      %v1395 = vadd.s32 %v1393, 4294967295
      %vm1396 = vcmp.ge.s32.totalorder %v1394, 0
      %vm1397 = vcmp.ge.s32.totalorder %v1395, 0
      %vm1398 = vcmp.lt.s32.totalorder %v1394, 8
      %vm1399 = vcmp.lt.s32.totalorder %v1395, 8
      %vm1400 = vmand %vm1396, %vm1398
      %vm1401 = vmand %vm1397, %vm1399
      %v1402 = vsel %vm1400, 1, 0
      %v1403 = vsel %vm1401, 1, 0
      %v1404 = vlaneseq
      %v1405 = vshrl.u32 %v1404, 7
      %v1406 = vsub.s32 0, %v1405
      %v1407 = vrot.slane %v1402, %v1406
      %v1408 = vlaneseq
      %v1409 = vshrl.u32 %v1408, 7
      %v1410 = vsub.s32 1, %v1409
      %v1411 = vrot.slane %v1402, %v1410
      %v1412 = vlaneseq
      %v1413 = vshrl.u32 %v1412, 7
      %v1414 = vsub.s32 2, %v1413
      %v1415 = vrot.slane %v1402, %v1414
      %v1416 = vlaneseq
      %v1417 = vshrl.u32 %v1416, 7
      %v1418 = vsub.s32 3, %v1417
      %v1419 = vrot.slane %v1402, %v1418
      %v1420 = vlaneseq
      %v1421 = vshrl.u32 %v1420, 7
      %v1422 = vsub.s32 4, %v1421
      %v1423 = vrot.slane %v1402, %v1422
      %v1424 = vlaneseq
      %v1425 = vshrl.u32 %v1424, 7
      %v1426 = vsub.s32 5, %v1425
      %v1427 = vrot.slane %v1402, %v1426
      %v1428 = vlaneseq
      %v1429 = vshrl.u32 %v1428, 7
      %v1430 = vsub.s32 6, %v1429
      %v1431 = vrot.slane %v1402, %v1430
      %v1432 = vlaneseq
      %v1433 = vshrl.u32 %v1432, 7
      %v1434 = vsub.s32 7, %v1433
      %v1435 = vrot.slane %v1402, %v1434
      %v1436 = vlaneseq
      %v1437 = vshrl.u32 %v1436, 7
      %v1438 = vsub.s32 0, %v1437
      %v1439 = vrot.slane %v1403, %v1438
      %v1440 = vlaneseq
      %v1441 = vshrl.u32 %v1440, 7
      %v1442 = vsub.s32 1, %v1441
      %v1443 = vrot.slane %v1403, %v1442
      %vm1444 = vcmp.ne.s32.totalorder %v1407, 0
      %vm1445 = vcmp.ne.s32.totalorder %v1411, 0
      %vm1446 = vcmp.ne.s32.totalorder %v1415, 0
      %vm1447 = vcmp.ne.s32.totalorder %v1419, 0
      %vm1448 = vcmp.ne.s32.totalorder %v1423, 0
      %vm1449 = vcmp.ne.s32.totalorder %v1427, 0
      %vm1450 = vcmp.ne.s32.totalorder %v1431, 0
      %vm1451 = vcmp.ne.s32.totalorder %v1435, 0
      %vm1452 = vcmp.ne.s32.totalorder %v1439, 0
      %vm1453 = vcmp.ne.s32.totalorder %v1443, 0
      %v1454 = vsel %vm1444, 1, 0
      %v1455 = vsel %vm1445, 1, 0
      %v1456 = vsel %vm1446, 1, 0
      %v1457 = vsel %vm1447, 1, 0
      %v1458 = vsel %vm1448, 1, 0
      %v1459 = vsel %vm1449, 1, 0
      %v1460 = vsel %vm1450, 1, 0
      %v1461 = vsel %vm1451, 1, 0
      %v1462 = vsel %vm1452, 1, 0
      %v1463 = vsel %vm1453, 1, 0
      %vm1464 = vcmp.eq.s32.totalorder %v1454, 1
      %vm1465 = vcmp.eq.s32.totalorder %v1455, 1
      %vm1466 = vcmp.eq.s32.totalorder %v1456, 1
      %vm1467 = vcmp.eq.s32.totalorder %v1457, 1
      %vm1468 = vcmp.eq.s32.totalorder %v1458, 1
      %vm1469 = vcmp.eq.s32.totalorder %v1459, 1
      %vm1470 = vcmp.eq.s32.totalorder %v1460, 1
      %vm1471 = vcmp.eq.s32.totalorder %v1461, 1
      %vm1472 = vcmp.eq.s32.totalorder %v1462, 1
      %vm1473 = vcmp.eq.s32.totalorder %v1463, 1
      %v1474 = vsel %vm1464, %v1381, 0.0
      %v1475 = vsel %vm1465, %v1382, 0.0
      %v1476 = vsel %vm1466, %v1383, 0.0
      %v1477 = vsel %vm1467, %v1384, 0.0
      %v1478 = vsel %vm1468, %v1385, 0.0
      %v1479 = vsel %vm1469, %v1386, 0.0
      %v1480 = vsel %vm1470, %v1387, 0.0
      %v1481 = vsel %vm1471, %v1388, 0.0
      %v1482 = vsel %vm1472, %v1389, 0.0
      %v1483 = vsel %vm1473, %v1390, 0.0
      %v1494 = vrot.slane %v1474, 7
      %v1495 = vrot.slane %v1475, 7
      %v1496 = vrot.slane %v1476, 7
      %v1497 = vrot.slane %v1477, 7
      %v1498 = vrot.slane %v1478, 7
      %v1499 = vrot.slane %v1479, 7
      %v1500 = vrot.slane %v1480, 7
      %v1501 = vrot.slane %v1481, 7
      %v1502 = vrot.slane %v1482, 7
      %v1503 = vrot.slane %v1483, 7
      %vm1514 = vcmask 1040384
      %v1515 = vsel %vm1514, 0.0, %v1494
      %v1516 = vsel %vm1514, 0.0, %v1495
      %v1517 = vsel %vm1514, 0.0, %v1496
      %v1518 = vsel %vm1514, 0.0, %v1497
      %v1519 = vsel %vm1514, 0.0, %v1498
      %v1520 = vsel %vm1514, 0.0, %v1499
      %v1521 = vsel %vm1514, 0.0, %v1500
      %v1522 = vsel %vm1514, 0.0, %v1501
      %v1523 = vsel %vm1514, 0.0, %v1502
      %v1524 = vsel %vm1514, 0.0, %v1503
      %v1525 = vsel %vm1514, %v1494, 0.0
      %v1526 = vsel %vm1514, %v1495, 0.0
      %v1527 = vsel %vm1514, %v1496, 0.0
      %v1528 = vsel %vm1514, %v1497, 0.0
      %v1529 = vsel %vm1514, %v1498, 0.0
      %v1530 = vsel %vm1514, %v1499, 0.0
      %v1531 = vsel %vm1514, %v1500, 0.0
      %v1532 = vsel %vm1514, %v1501, 0.0
      %v1533 = vsel %vm1514, %v1502, 0.0
      %v1534 = vsel %vm1514, %v1503, 0.0
      %v1551 = vrot.slane %v1515, 1
      %v1552 = vrot.slane %v1525, 1
      %v1553 = vsel %vm418, %v1551, %v1552
      %v1554 = vrot.slane %v1516, 1
      %v1555 = vrot.slane %v1526, 1
      %v1556 = vsel %vm418, %v1554, %v1555
      %v1557 = vrot.slane %v1517, 1
      %v1558 = vrot.slane %v1527, 1
      %v1559 = vsel %vm418, %v1557, %v1558
      %v1560 = vrot.slane %v1518, 1
      %v1561 = vrot.slane %v1528, 1
      %v1562 = vsel %vm418, %v1560, %v1561
      %v1563 = vrot.slane %v1519, 1
      %v1564 = vrot.slane %v1529, 1
      %v1565 = vsel %vm418, %v1563, %v1564
      %v1566 = vrot.slane %v1520, 1
      %v1567 = vrot.slane %v1530, 1
      %v1568 = vsel %vm418, %v1566, %v1567
      %v1569 = vrot.slane %v1521, 1
      %v1570 = vrot.slane %v1531, 1
      %v1571 = vsel %vm418, %v1569, %v1570
      %v1572 = vrot.slane %v1522, 1
      %v1573 = vrot.slane %v1532, 1
      %v1574 = vsel %vm418, %v1572, %v1573
      %v1583 = vrot.slane %v1515, 2
      %v1584 = vrot.slane %v1525, 2
      %v1585 = vsel %vm459, %v1583, %v1584
      %v1586 = vrot.slane %v1516, 2
      %v1587 = vrot.slane %v1526, 2
      %v1588 = vsel %vm459, %v1586, %v1587
      %v1589 = vrot.slane %v1517, 2
      %v1590 = vrot.slane %v1527, 2
      %v1591 = vsel %vm459, %v1589, %v1590
      %v1592 = vrot.slane %v1518, 2
      %v1593 = vrot.slane %v1528, 2
      %v1594 = vsel %vm459, %v1592, %v1593
      %v1595 = vrot.slane %v1519, 2
      %v1596 = vrot.slane %v1529, 2
      %v1597 = vsel %vm459, %v1595, %v1596
      %v1598 = vrot.slane %v1520, 2
      %v1599 = vrot.slane %v1530, 2
      %v1600 = vsel %vm459, %v1598, %v1599
      %v1601 = vrot.slane %v1521, 2
      %v1602 = vrot.slane %v1531, 2
      %v1603 = vsel %vm459, %v1601, %v1602
      %v1604 = vrot.slane %v1522, 2
      %v1605 = vrot.slane %v1532, 2
      %v1606 = vsel %vm459, %v1604, %v1605
      %v1615 = vld [vmem:[%s3] sm:$0xff]
      %v1616 = vld [vmem:[%s3 + $0x8] sm:$0xff]
      %v1617 = vld [vmem:[%s3 + $0x10] sm:$0xff]
      %v1618 = vld [vmem:[%s3 + $0x18] sm:$0xff]
      %v1619 = vld [vmem:[%s3 + $0x20] sm:$0xff]
      %v1620 = vld [vmem:[%s3 + $0x28] sm:$0xff]
      %v1621 = vld [vmem:[%s3 + $0x30] sm:$0xff]
      %v1622 = vld [vmem:[%s3 + $0x38] sm:$0xff]
      %v1623 = vld [vmem:[%s3 + $0x40] sm:$0xff]
      %v1624 = vld [vmem:[%s3 + $0x48] sm:$0xff]
      %v1625 = vld [vmem:[%s3 + $0x50] sm:$0xff]
      %v1626 = vld [vmem:[%s3 + $0x58] sm:$0xff]
      %v1627 = vld [vmem:[%s3 + $0x60] sm:$0xff]
      %v1628 = vld [vmem:[%s3 + $0x68] sm:$0xff]
      %v1629 = vld [vmem:[%s3 + $0x70] sm:$0xff]
      %v1630 = vld [vmem:[%s3 + $0x78] sm:$0xff]
      %v1631 = vld [vmem:[%s3 + $0x80] sm:$0xff]
      %v1632 = vld [vmem:[%s3 + $0x88] sm:$0xff]
      %v1633 = vld [vmem:[%s3 + $0x90] sm:$0xff]
      %v1634 = vld [vmem:[%s3 + $0x98] sm:$0xff]
      %v1635 = vld [vmem:[%s3 + $0xa0] sm:$0xff]
      %v1636 = vld [vmem:[%s3 + $0xa8] sm:$0xff]
      %v1637 = vld [vmem:[%s3 + $0xb0] sm:$0xff]
      %v1638 = vld [vmem:[%s3 + $0xb8] sm:$0xff]
      %v1639 = vld [vmem:[%s3 + $0xc0] sm:$0xff]
      %v1640 = vld [vmem:[%s3 + $0xc8] sm:$0xff]
      %v1641 = vld [vmem:[%s3 + $0xd0] sm:$0xff]
      %v1642 = vld [vmem:[%s3 + $0xd8] sm:$0xff]
      %v1643 = vld [vmem:[%s3 + $0xe0] sm:$0xff]
      %v1644 = vld [vmem:[%s3 + $0xe8] sm:$0xff]
      %v1645 = vld [vmem:[%s3 + $0xf0] sm:$0xff]
      %v1646 = vld [vmem:[%s3 + $0xf8] sm:$0xff]
      %v1647 = vld [vmem:[%s3 + $0x100] sm:$0xff]
      %v1648 = vld [vmem:[%s3 + $0x108] sm:$0xff]
      %v1649 = vld [vmem:[%s3 + $0x110] sm:$0xff]
      %v1650 = vld [vmem:[%s3 + $0x118] sm:$0xff]
      %v1651 = vld [vmem:[%s3 + $0x120] sm:$0xff]
      %v1652 = vld [vmem:[%s3 + $0x128] sm:$0xff]
      %v1653 = vld [vmem:[%s3 + $0x130] sm:$0xff]
      %v1654 = vld [vmem:[%s3 + $0x138] sm:$0xff]
      %v1655 = vld [vmem:[%s3 + $0x140] sm:$0xff]
      %v1656 = vld [vmem:[%s3 + $0x148] sm:$0xff]
      %v1657 = vld [vmem:[%s3 + $0x150] sm:$0xff]
      %v1658 = vld [vmem:[%s3 + $0x158] sm:$0xff]
      %v1659 = vld [vmem:[%s3 + $0x160] sm:$0xff]
      %v1660 = vld [vmem:[%s3 + $0x168] sm:$0xff]
      %v1661 = vld [vmem:[%s3 + $0x170] sm:$0xff]
      %v1662 = vld [vmem:[%s3 + $0x178] sm:$0xff]
      %v1665 = vrot.slane %v1523, 1
      %v1666 = vrot.slane %v1533, 1
      %v1667 = vsel %vm418, %v1665, %v1666
      %v1669 = vrot.slane %v1523, 2
      %v1670 = vrot.slane %v1533, 2
      %v1671 = vsel %vm459, %v1669, %v1670
      %v1673 = vld [vmem:[%s3 + $0x180] sm:$0xff]
      %v1674 = vld [vmem:[%s3 + $0x188] sm:$0xff]
      %v1675 = vld [vmem:[%s3 + $0x190] sm:$0xff]
      %v1676 = vld [vmem:[%s3 + $0x198] sm:$0xff]
      %v1677 = vld [vmem:[%s3 + $0x1a0] sm:$0xff]
      %v1678 = vld [vmem:[%s3 + $0x1a8] sm:$0xff]
      %v1679 = vld [vmem:[%s3 + $0x1b0] sm:$0xff]
      %v1680 = vld [vmem:[%s3 + $0x1b8] sm:$0xff]
      %v1681 = vld [vmem:[%s3 + $0x1c0] sm:$0xff]
      %v1682 = vld [vmem:[%s3 + $0x1c8] sm:$0xff]
      %v1683 = vld [vmem:[%s3 + $0x1d0] sm:$0xff]
      %v1684 = vld [vmem:[%s3 + $0x1d8] sm:$0xff]
      %v1685 = vld [vmem:[%s3 + $0x1e0] sm:$0xff]
      %v1686 = vld [vmem:[%s3 + $0x1e8] sm:$0xff]
      %v1687 = vld [vmem:[%s3 + $0x1f0] sm:$0xff]
      %v1688 = vld [vmem:[%s3 + $0x1f8] sm:$0xff]
      %v1689 = vld [vmem:[%s3 + $0x200] sm:$0xff]
      %v1690 = vld [vmem:[%s3 + $0x208] sm:$0xff]
      %v1691 = vld [vmem:[%s3 + $0x210] sm:$0xff]
      %v1692 = vld [vmem:[%s3 + $0x218] sm:$0xff]
      %v1693 = vld [vmem:[%s3 + $0x220] sm:$0xff]
      %v1694 = vld [vmem:[%s3 + $0x228] sm:$0xff]
      %v1695 = vld [vmem:[%s3 + $0x230] sm:$0xff]
      %v1696 = vld [vmem:[%s3 + $0x238] sm:$0xff]
      %v1697 = vld [vmem:[%s3 + $0x240] sm:$0xff]
      %v1698 = vld [vmem:[%s3 + $0x248] sm:$0xff]
      %v1699 = vld [vmem:[%s3 + $0x250] sm:$0xff]
      %v1700 = vld [vmem:[%s3 + $0x258] sm:$0xff]
      %v1701 = vld [vmem:[%s3 + $0x260] sm:$0xff]
      %v1702 = vld [vmem:[%s3 + $0x268] sm:$0xff]
      %v1703 = vld [vmem:[%s3 + $0x270] sm:$0xff]
      %v1704 = vld [vmem:[%s3 + $0x278] sm:$0xff]
      %v1705 = vld [vmem:[%s3 + $0x280] sm:$0xff]
      %v1706 = vld [vmem:[%s3 + $0x288] sm:$0xff]
      %v1707 = vld [vmem:[%s3 + $0x290] sm:$0xff]
      %v1708 = vld [vmem:[%s3 + $0x298] sm:$0xff]
      %v1709 = vld [vmem:[%s3 + $0x2a0] sm:$0xff]
      %v1710 = vld [vmem:[%s3 + $0x2a8] sm:$0xff]
      %v1711 = vld [vmem:[%s3 + $0x2b0] sm:$0xff]
      %v1712 = vld [vmem:[%s3 + $0x2b8] sm:$0xff]
      %v1713 = vld [vmem:[%s3 + $0x2c0] sm:$0xff]
      %v1714 = vld [vmem:[%s3 + $0x2c8] sm:$0xff]
      %v1715 = vld [vmem:[%s3 + $0x2d0] sm:$0xff]
      %v1716 = vld [vmem:[%s3 + $0x2d8] sm:$0xff]
      %v1717 = vld [vmem:[%s3 + $0x2e0] sm:$0xff]
      %v1718 = vld [vmem:[%s3 + $0x2e8] sm:$0xff]
      %v1719 = vld [vmem:[%s3 + $0x2f0] sm:$0xff]
      %v1720 = vld [vmem:[%s3 + $0x2f8] sm:$0xff]
      %1721 = vmatprep.subr.mxu0 0.0
      %1722 = vmatpush1.msra.mxu0 %v1673
      %1723 = vmatprep.subr.mxu0 0.0
      %1724 = vmatpush1.msra.mxu0 %v1674
      %1725 = vmatprep.subr.mxu0 0.0
      %1726 = vmatpush1.msra.mxu0 %v1675
      %1727 = vmatprep.subr.mxu0 0.0
      %1728 = vmatpush1.msra.mxu0 %v1676
      %1729 = vmatprep.subr.mxu0 0.0
      %1730 = vmatpush1.msra.mxu0 %v1677
      %1731 = vmatprep.subr.mxu0 0.0
      %1732 = vmatpush1.msra.mxu0 %v1678
      %1733 = vmatprep.subr.mxu0 0.0
      %1734 = vmatpush1.msra.mxu0 %v1679
      %1735 = vmatprep.subr.mxu0 0.0
      %1736 = vmatpush1.msra.mxu0 %v1680
      %1737 = vmatprep.subr.mxu0 0.0
      %1738 = vmatpush1.msra.mxu0 %v1681
      %1739 = vmatprep.subr.mxu0 0.0
      %1740 = vmatpush1.msra.mxu0 %v1682
      %1741 = vmatprep.subr.mxu0 0.0
      %1742 = vmatpush1.msra.mxu0 %v1683
      %1743 = vmatprep.subr.mxu0 0.0
      %1744 = vmatpush1.msra.mxu0 %v1684
      %1745 = vmatprep.subr.mxu0 0.0
      %1746 = vmatpush1.msra.mxu0 %v1685
      %1747 = vmatprep.subr.mxu0 0.0
      %1748 = vmatpush1.msra.mxu0 %v1686
      %1749 = vmatprep.subr.mxu0 0.0
      %1750 = vmatpush1.msra.mxu0 %v1687
      %1751 = vmatprep.subr.mxu0 0.0
      %1752 = vmatpush1.msra.mxu0 %v1688
      %1753 = vmatprep.subr.mxu0 0.0
      %1754 = vmatpush1.msra.mxu0 %v1689
      %1755 = vmatprep.subr.mxu0 0.0
      %1756 = vmatpush1.msra.mxu0 %v1690
      %1757 = vmatprep.subr.mxu0 0.0
      %1758 = vmatpush1.msra.mxu0 %v1691
      %1759 = vmatprep.subr.mxu0 0.0
      %1760 = vmatpush1.msra.mxu0 %v1692
      %1761 = vmatprep.subr.mxu0 0.0
      %1762 = vmatpush1.msra.mxu0 %v1693
      %1763 = vmatprep.subr.mxu0 0.0
      %1764 = vmatpush1.msra.mxu0 %v1694
      %1765 = vmatprep.subr.mxu0 0.0
      %1766 = vmatpush1.msra.mxu0 %v1695
      %1767 = vmatprep.subr.mxu0 0.0
      %1768 = vmatpush1.msra.mxu0 %v1696
      %1769 = vmatprep.subr.mxu0 0.0
      %1770 = vmatpush1.msra.mxu0 %v1697
      %1771 = vmatprep.subr.mxu0 0.0
      %1772 = vmatpush1.msra.mxu0 %v1698
      %1773 = vmatprep.subr.mxu0 0.0
      %1774 = vmatpush1.msra.mxu0 %v1699
      %1775 = vmatprep.subr.mxu0 0.0
      %1776 = vmatpush1.msra.mxu0 %v1700
      %1777 = vmatprep.subr.mxu0 0.0
      %1778 = vmatpush1.msra.mxu0 %v1701
      %1779 = vmatprep.subr.mxu0 0.0
      %1780 = vmatpush1.msra.mxu0 %v1702
      %1781 = vmatprep.subr.mxu0 0.0
      %1782 = vmatpush1.msra.mxu0 %v1703
      %1783 = vmatprep.subr.mxu0 0.0
      %1784 = vmatpush1.msra.mxu0 %v1704
      %1785 = vmatprep.mubr.f32.mxu0 %v1556
      %1786 = vmatmul.mubr.f32.gmra.mrb[0].mxu0 %v1516
      %v1787 = vpop.f32.mrb[0].mxu0
      %v1788 = vadd.f32 0.0, %v1787
      %v1789 = vpop.f32.mrb[0].mxu0
      %1790 = vmatprep.mubr.f32.mxu0 %v1559
      %1791 = vmatmul.mubr.f32.gmra.mrb[0].mxu0 %v1517
      %v1792 = vpop.f32.mrb[0].mxu0
      %v1793 = vadd.f32 0.0, %v1792
      %v1794 = vpop.f32.mrb[0].mxu0
      %1795 = vmatprep.mubr.f32.mxu0 %v1562
      %1796 = vmatmul.mubr.f32.gmra.mrb[0].mxu0 %v1518
      %v1797 = vpop.f32.mrb[0].mxu0
      %v1798 = vadd.f32 0.0, %v1797
      %v1799 = vpop.f32.mrb[0].mxu0
      %1800 = vmatprep.mubr.f32.mxu0 %v1565
      %1801 = vmatmul.mubr.f32.gmra.mrb[0].mxu0 %v1519
      %v1802 = vpop.f32.mrb[0].mxu0
      %v1803 = vadd.f32 0.0, %v1802
      %v1804 = vpop.f32.mrb[0].mxu0
      %1805 = vmatprep.mubr.f32.mxu0 %v1568
      %1806 = vmatmul.mubr.f32.gmra.mrb[0].mxu0 %v1520
      %v1807 = vpop.f32.mrb[0].mxu0
      %v1808 = vadd.f32 0.0, %v1807
      %v1809 = vpop.f32.mrb[0].mxu0
      %1810 = vmatprep.mubr.f32.mxu0 %v1571
      %1811 = vmatmul.mubr.f32.gmra.mrb[0].mxu0 %v1521
      %v1812 = vpop.f32.mrb[0].mxu0
      %v1813 = vadd.f32 0.0, %v1812
      %v1814 = vpop.f32.mrb[0].mxu0
      %1815 = vmatprep.mubr.f32.mxu0 %v1574
      %1816 = vmatmul.mubr.f32.gmra.mrb[0].mxu0 %v1522
      %v1817 = vpop.f32.mrb[0].mxu0
      %v1818 = vadd.f32 0.0, %v1817
      %v1819 = vpop.f32.mrb[0].mxu0
      %1820 = vmatprep.mubr.f32.mxu0 %v1667
      %1821 = vmatmul.mubr.f32.gmra.mrb[0].mxu0 %v1523
      %v1822 = vpop.f32.mrb[0].mxu0
      %v1823 = vadd.f32 0.0, %v1822
      %v1824 = vpop.f32.mrb[0].mxu0
      %1825 = vdwg.mxu0
      %1826 = vmatprep.subr.mxu0 0.0
      %1827 = vmatpush1.msra.mxu0 %v1705
      %1828 = vmatprep.subr.mxu0 0.0
      %1829 = vmatpush1.msra.mxu0 %v1706
      %1830 = vmatprep.subr.mxu0 0.0
      %1831 = vmatpush1.msra.mxu0 %v1707
      %1832 = vmatprep.subr.mxu0 0.0
      %1833 = vmatpush1.msra.mxu0 %v1708
      %1834 = vmatprep.subr.mxu0 0.0
      %1835 = vmatpush1.msra.mxu0 %v1709
      %1836 = vmatprep.subr.mxu0 0.0
      %1837 = vmatpush1.msra.mxu0 %v1710
      %1838 = vmatprep.subr.mxu0 0.0
      %1839 = vmatpush1.msra.mxu0 %v1711
      %1840 = vmatprep.subr.mxu0 0.0
      %1841 = vmatpush1.msra.mxu0 %v1712
      %1842 = vmatprep.subr.mxu0 0.0
      %1843 = vmatpush1.msra.mxu0 %v1713
      %1844 = vmatprep.subr.mxu0 0.0
      %1845 = vmatpush1.msra.mxu0 %v1714
      %1846 = vmatprep.subr.mxu0 0.0
      %1847 = vmatpush1.msra.mxu0 %v1715
      %1848 = vmatprep.subr.mxu0 0.0
      %1849 = vmatpush1.msra.mxu0 %v1716
      %1850 = vmatprep.subr.mxu0 0.0
      %1851 = vmatpush1.msra.mxu0 %v1717
      %1852 = vmatprep.subr.mxu0 0.0
      %1853 = vmatpush1.msra.mxu0 %v1718
      %1854 = vmatprep.subr.mxu0 0.0
      %1855 = vmatpush1.msra.mxu0 %v1719
      %1856 = vmatprep.subr.mxu0 0.0
      %1857 = vmatpush1.msra.mxu0 %v1720
      %1858 = vmatprep.subr.mxu0 0.0
      %1859 = vmatpush1.msra.mxu0 0.0
      %1860 = vmatprep.subr.mxu0 0.0
      %1861 = vmatpush1.msra.mxu0 0.0
      %1862 = vmatprep.subr.mxu0 0.0
      %1863 = vmatpush1.msra.mxu0 0.0
      %1864 = vmatprep.subr.mxu0 0.0
      %1865 = vmatpush1.msra.mxu0 0.0
      %1866 = vmatprep.subr.mxu0 0.0
      %1867 = vmatpush1.msra.mxu0 0.0
      %1868 = vmatprep.subr.mxu0 0.0
      %1869 = vmatpush1.msra.mxu0 0.0
      %1870 = vmatprep.subr.mxu0 0.0
      %1871 = vmatpush1.msra.mxu0 0.0
      %1872 = vmatprep.subr.mxu0 0.0
      %1873 = vmatpush1.msra.mxu0 0.0
      %1874 = vmatprep.subr.mxu0 0.0
      %1875 = vmatpush1.msra.mxu0 0.0
      %1876 = vmatprep.subr.mxu0 0.0
      %1877 = vmatpush1.msra.mxu0 0.0
      %1878 = vmatprep.subr.mxu0 0.0
      %1879 = vmatpush1.msra.mxu0 0.0
      %1880 = vmatprep.subr.mxu0 0.0
      %1881 = vmatpush1.msra.mxu0 0.0
      %1882 = vmatprep.subr.mxu0 0.0
      %1883 = vmatpush1.msra.mxu0 0.0
      %1884 = vmatprep.subr.mxu0 0.0
      %1885 = vmatpush1.msra.mxu0 0.0
      %1886 = vmatprep.subr.mxu0 0.0
      %1887 = vmatpush1.msra.mxu0 0.0
      %1888 = vmatprep.subr.mxu0 0.0
      %1889 = vmatpush1.msra.mxu0 0.0
      %1890 = vmatprep.mubr.f32.mxu0 0.0
      %1891 = vmatmul.mubr.f32.gmra.mrb[0].mxu0 %v1588
      %v1892 = vpop.f32.mrb[0].mxu0
      %v1893 = vadd.f32 %v1788, %v1892
      %v1894 = vpop.f32.mrb[0].mxu0
      %1895 = vmatprep.mubr.f32.mxu0 0.0
      %1896 = vmatmul.mubr.f32.gmra.mrb[0].mxu0 %v1591
      %v1897 = vpop.f32.mrb[0].mxu0
      %v1898 = vadd.f32 %v1793, %v1897
      %v1899 = vpop.f32.mrb[0].mxu0
      %1900 = vmatprep.mubr.f32.mxu0 0.0
      %1901 = vmatmul.mubr.f32.gmra.mrb[0].mxu0 %v1594
      %v1902 = vpop.f32.mrb[0].mxu0
      %v1903 = vadd.f32 %v1798, %v1902
      %v1904 = vpop.f32.mrb[0].mxu0
      %1905 = vmatprep.mubr.f32.mxu0 0.0
      %1906 = vmatmul.mubr.f32.gmra.mrb[0].mxu0 %v1597
      %v1907 = vpop.f32.mrb[0].mxu0
      %v1908 = vadd.f32 %v1803, %v1907
      %v1909 = vpop.f32.mrb[0].mxu0
      %1910 = vmatprep.mubr.f32.mxu0 0.0
      %1911 = vmatmul.mubr.f32.gmra.mrb[0].mxu0 %v1600
      %v1912 = vpop.f32.mrb[0].mxu0
      %v1913 = vadd.f32 %v1808, %v1912
      %v1914 = vpop.f32.mrb[0].mxu0
      %1915 = vmatprep.mubr.f32.mxu0 0.0
      %1916 = vmatmul.mubr.f32.gmra.mrb[0].mxu0 %v1603
      %v1917 = vpop.f32.mrb[0].mxu0
      %v1918 = vadd.f32 %v1813, %v1917
      %v1919 = vpop.f32.mrb[0].mxu0
      %1920 = vmatprep.mubr.f32.mxu0 0.0
      %1921 = vmatmul.mubr.f32.gmra.mrb[0].mxu0 %v1606
      %v1922 = vpop.f32.mrb[0].mxu0
      %v1923 = vadd.f32 %v1818, %v1922
      %v1924 = vpop.f32.mrb[0].mxu0
      %1925 = vmatprep.mubr.f32.mxu0 0.0
      %1926 = vmatmul.mubr.f32.gmra.mrb[0].mxu0 %v1671
      %v1927 = vpop.f32.mrb[0].mxu0
      %v1928 = vadd.f32 %v1823, %v1927
      %v1929 = vpop.f32.mrb[0].mxu0
      %1930 = vdwg.mxu0
      %1931 = vmatprep.subr.mxu0 0.0
      %1932 = vmatpush1.msra.mxu0 %v1615
      %1933 = vmatprep.subr.mxu0 0.0
      %1934 = vmatpush1.msra.mxu0 %v1616
      %1935 = vmatprep.subr.mxu0 0.0
      %1936 = vmatpush1.msra.mxu0 %v1617
      %1937 = vmatprep.subr.mxu0 0.0
      %1938 = vmatpush1.msra.mxu0 %v1618
      %1939 = vmatprep.subr.mxu0 0.0
      %1940 = vmatpush1.msra.mxu0 %v1619
      %1941 = vmatprep.subr.mxu0 0.0
      %1942 = vmatpush1.msra.mxu0 %v1620
      %1943 = vmatprep.subr.mxu0 0.0
      %1944 = vmatpush1.msra.mxu0 %v1621
      %1945 = vmatprep.subr.mxu0 0.0
      %1946 = vmatpush1.msra.mxu0 %v1622
      %1947 = vmatprep.subr.mxu0 0.0
      %1948 = vmatpush1.msra.mxu0 %v1623
      %1949 = vmatprep.subr.mxu0 0.0
      %1950 = vmatpush1.msra.mxu0 %v1624
      %1951 = vmatprep.subr.mxu0 0.0
      %1952 = vmatpush1.msra.mxu0 %v1625
      %1953 = vmatprep.subr.mxu0 0.0
      %1954 = vmatpush1.msra.mxu0 %v1626
      %1955 = vmatprep.subr.mxu0 0.0
      %1956 = vmatpush1.msra.mxu0 %v1627
      %1957 = vmatprep.subr.mxu0 0.0
      %1958 = vmatpush1.msra.mxu0 %v1628
      %1959 = vmatprep.subr.mxu0 0.0
      %1960 = vmatpush1.msra.mxu0 %v1629
      %1961 = vmatprep.subr.mxu0 0.0
      %1962 = vmatpush1.msra.mxu0 %v1630
      %1963 = vmatprep.subr.mxu0 0.0
      %1964 = vmatpush1.msra.mxu0 %v1631
      %1965 = vmatprep.subr.mxu0 0.0
      %1966 = vmatpush1.msra.mxu0 %v1632
      %1967 = vmatprep.subr.mxu0 0.0
      %1968 = vmatpush1.msra.mxu0 %v1633
      %1969 = vmatprep.subr.mxu0 0.0
      %1970 = vmatpush1.msra.mxu0 %v1634
      %1971 = vmatprep.subr.mxu0 0.0
      %1972 = vmatpush1.msra.mxu0 %v1635
      %1973 = vmatprep.subr.mxu0 0.0
      %1974 = vmatpush1.msra.mxu0 %v1636
      %1975 = vmatprep.subr.mxu0 0.0
      %1976 = vmatpush1.msra.mxu0 %v1637
      %1977 = vmatprep.subr.mxu0 0.0
      %1978 = vmatpush1.msra.mxu0 %v1638
      %1979 = vmatprep.subr.mxu0 0.0
      %1980 = vmatpush1.msra.mxu0 %v1639
      %1981 = vmatprep.subr.mxu0 0.0
      %1982 = vmatpush1.msra.mxu0 %v1640
      %1983 = vmatprep.subr.mxu0 0.0
      %1984 = vmatpush1.msra.mxu0 %v1641
      %1985 = vmatprep.subr.mxu0 0.0
      %1986 = vmatpush1.msra.mxu0 %v1642
      %1987 = vmatprep.subr.mxu0 0.0
      %1988 = vmatpush1.msra.mxu0 %v1643
      %1989 = vmatprep.subr.mxu0 0.0
      %1990 = vmatpush1.msra.mxu0 %v1644
      %1991 = vmatprep.subr.mxu0 0.0
      %1992 = vmatpush1.msra.mxu0 %v1645
      %1993 = vmatprep.subr.mxu0 0.0
      %1994 = vmatpush1.msra.mxu0 %v1646
      %1995 = vmatprep.mubr.f32.mxu0 %v1553
      %1996 = vmatmul.mubr.f32.gmra.mrb[0].mxu0 %v1515
      %v1997 = vpop.f32.mrb[0].mxu0
      %v1998 = vadd.f32 %v1893, %v1997
      %v1999 = vpop.f32.mrb[0].mxu0
      %2000 = vmatprep.mubr.f32.mxu0 %v1556
      %2001 = vmatmul.mubr.f32.gmra.mrb[0].mxu0 %v1516
      %v2002 = vpop.f32.mrb[0].mxu0
      %v2003 = vadd.f32 %v1898, %v2002
      %v2004 = vpop.f32.mrb[0].mxu0
      %2005 = vmatprep.mubr.f32.mxu0 %v1559
      %2006 = vmatmul.mubr.f32.gmra.mrb[0].mxu0 %v1517
      %v2007 = vpop.f32.mrb[0].mxu0
      %v2008 = vadd.f32 %v1903, %v2007
      %v2009 = vpop.f32.mrb[0].mxu0
      %2010 = vmatprep.mubr.f32.mxu0 %v1562
      %2011 = vmatmul.mubr.f32.gmra.mrb[0].mxu0 %v1518
      %v2012 = vpop.f32.mrb[0].mxu0
      %v2013 = vadd.f32 %v1908, %v2012
      %v2014 = vpop.f32.mrb[0].mxu0
      %2015 = vmatprep.mubr.f32.mxu0 %v1565
      %2016 = vmatmul.mubr.f32.gmra.mrb[0].mxu0 %v1519
      %v2017 = vpop.f32.mrb[0].mxu0
      %v2018 = vadd.f32 %v1913, %v2017
      %v2019 = vpop.f32.mrb[0].mxu0
      %2020 = vmatprep.mubr.f32.mxu0 %v1568
      %2021 = vmatmul.mubr.f32.gmra.mrb[0].mxu0 %v1520
      %v2022 = vpop.f32.mrb[0].mxu0
      %v2023 = vadd.f32 %v1918, %v2022
      %v2024 = vpop.f32.mrb[0].mxu0
      %2025 = vmatprep.mubr.f32.mxu0 %v1571
      %2026 = vmatmul.mubr.f32.gmra.mrb[0].mxu0 %v1521
      %v2027 = vpop.f32.mrb[0].mxu0
      %v2028 = vadd.f32 %v1923, %v2027
      %v2029 = vpop.f32.mrb[0].mxu0
      %2030 = vmatprep.mubr.f32.mxu0 %v1574
      %2031 = vmatmul.mubr.f32.gmra.mrb[0].mxu0 %v1522
      %v2032 = vpop.f32.mrb[0].mxu0
      %v2033 = vadd.f32 %v1928, %v2032
      %v2034 = vpop.f32.mrb[0].mxu0
      %2035 = vdwg.mxu0
      %2036 = vmatprep.subr.mxu0 0.0
      %2037 = vmatpush1.msra.mxu0 %v1647
      %2038 = vmatprep.subr.mxu0 0.0
      %2039 = vmatpush1.msra.mxu0 %v1648
      %2040 = vmatprep.subr.mxu0 0.0
      %2041 = vmatpush1.msra.mxu0 %v1649
      %2042 = vmatprep.subr.mxu0 0.0
      %2043 = vmatpush1.msra.mxu0 %v1650
      %2044 = vmatprep.subr.mxu0 0.0
      %2045 = vmatpush1.msra.mxu0 %v1651
      %2046 = vmatprep.subr.mxu0 0.0
      %2047 = vmatpush1.msra.mxu0 %v1652
      %2048 = vmatprep.subr.mxu0 0.0
      %2049 = vmatpush1.msra.mxu0 %v1653
      %2050 = vmatprep.subr.mxu0 0.0
      %2051 = vmatpush1.msra.mxu0 %v1654
      %2052 = vmatprep.subr.mxu0 0.0
      %2053 = vmatpush1.msra.mxu0 %v1655
      %2054 = vmatprep.subr.mxu0 0.0
      %2055 = vmatpush1.msra.mxu0 %v1656
      %2056 = vmatprep.subr.mxu0 0.0
      %2057 = vmatpush1.msra.mxu0 %v1657
      %2058 = vmatprep.subr.mxu0 0.0
      %2059 = vmatpush1.msra.mxu0 %v1658
      %2060 = vmatprep.subr.mxu0 0.0
      %2061 = vmatpush1.msra.mxu0 %v1659
      %2062 = vmatprep.subr.mxu0 0.0
      %2063 = vmatpush1.msra.mxu0 %v1660
      %2064 = vmatprep.subr.mxu0 0.0
      %2065 = vmatpush1.msra.mxu0 %v1661
      %2066 = vmatprep.subr.mxu0 0.0
      %2067 = vmatpush1.msra.mxu0 %v1662
      %2068 = vmatprep.subr.mxu0 0.0
      %2069 = vmatpush1.msra.mxu0 0.0
      %2070 = vmatprep.subr.mxu0 0.0
      %2071 = vmatpush1.msra.mxu0 0.0
      %2072 = vmatprep.subr.mxu0 0.0
      %2073 = vmatpush1.msra.mxu0 0.0
      %2074 = vmatprep.subr.mxu0 0.0
      %2075 = vmatpush1.msra.mxu0 0.0
      %2076 = vmatprep.subr.mxu0 0.0
      %2077 = vmatpush1.msra.mxu0 0.0
      %2078 = vmatprep.subr.mxu0 0.0
      %2079 = vmatpush1.msra.mxu0 0.0
      %2080 = vmatprep.subr.mxu0 0.0
      %2081 = vmatpush1.msra.mxu0 0.0
      %2082 = vmatprep.subr.mxu0 0.0
      %2083 = vmatpush1.msra.mxu0 0.0
      %2084 = vmatprep.subr.mxu0 0.0
      %2085 = vmatpush1.msra.mxu0 0.0
      %2086 = vmatprep.subr.mxu0 0.0
      %2087 = vmatpush1.msra.mxu0 0.0
      %2088 = vmatprep.subr.mxu0 0.0
      %2089 = vmatpush1.msra.mxu0 0.0
      %2090 = vmatprep.subr.mxu0 0.0
      %2091 = vmatpush1.msra.mxu0 0.0
      %2092 = vmatprep.subr.mxu0 0.0
      %2093 = vmatpush1.msra.mxu0 0.0
      %2094 = vmatprep.subr.mxu0 0.0
      %2095 = vmatpush1.msra.mxu0 0.0
      %2096 = vmatprep.subr.mxu0 0.0
      %2097 = vmatpush1.msra.mxu0 0.0
      %2098 = vmatprep.subr.mxu0 0.0
      %2099 = vmatpush1.msra.mxu0 0.0
      %2100 = vmatprep.mubr.f32.mxu0 0.0
      %2101 = vmatmul.mubr.f32.gmra.mrb[0].mxu0 %v1585
      %v2102 = vpop.f32.mrb[0].mxu0
      %v2103 = vadd.f32 %v1998, %v2102
      %v2104 = vpop.f32.mrb[0].mxu0
      %2105 = vmatprep.mubr.f32.mxu0 0.0
      %2106 = vmatmul.mubr.f32.gmra.mrb[0].mxu0 %v1588
      %v2107 = vpop.f32.mrb[0].mxu0
      %v2108 = vadd.f32 %v2003, %v2107
      %v2109 = vpop.f32.mrb[0].mxu0
      %2110 = vmatprep.mubr.f32.mxu0 0.0
      %2111 = vmatmul.mubr.f32.gmra.mrb[0].mxu0 %v1591
      %v2112 = vpop.f32.mrb[0].mxu0
      %v2113 = vadd.f32 %v2008, %v2112
      %v2114 = vpop.f32.mrb[0].mxu0
      %2115 = vmatprep.mubr.f32.mxu0 0.0
      %2116 = vmatmul.mubr.f32.gmra.mrb[0].mxu0 %v1594
      %v2117 = vpop.f32.mrb[0].mxu0
      %v2118 = vadd.f32 %v2013, %v2117
      %v2119 = vpop.f32.mrb[0].mxu0
      %2120 = vmatprep.mubr.f32.mxu0 0.0
      %2121 = vmatmul.mubr.f32.gmra.mrb[0].mxu0 %v1597
      %v2122 = vpop.f32.mrb[0].mxu0
      %v2123 = vadd.f32 %v2018, %v2122
      %v2124 = vpop.f32.mrb[0].mxu0
      %2125 = vmatprep.mubr.f32.mxu0 0.0
      %2126 = vmatmul.mubr.f32.gmra.mrb[0].mxu0 %v1600
      %v2127 = vpop.f32.mrb[0].mxu0
      %v2128 = vadd.f32 %v2023, %v2127
      %v2129 = vpop.f32.mrb[0].mxu0
      %2130 = vmatprep.mubr.f32.mxu0 0.0
      %2131 = vmatmul.mubr.f32.gmra.mrb[0].mxu0 %v1603
      %v2132 = vpop.f32.mrb[0].mxu0
      %v2133 = vadd.f32 %v2028, %v2132
      %v2134 = vpop.f32.mrb[0].mxu0
      %2135 = vmatprep.mubr.f32.mxu0 0.0
      %2136 = vmatmul.mubr.f32.gmra.mrb[0].mxu0 %v1606
      %v2137 = vpop.f32.mrb[0].mxu0
      %v2138 = vadd.f32 %v2033, %v2137
      %v2139 = vpop.f32.mrb[0].mxu0
      %2140 = vdwg.mxu0
      %v2143 = vrot.slane %v1524, 1
      %v2144 = vrot.slane %v1534, 1
      %v2145 = vsel %vm418, %v2143, %v2144
      %v2147 = vrot.slane %v1524, 2
      %v2148 = vrot.slane %v1534, 2
      %v2149 = vsel %vm459, %v2147, %v2148
      %v2151 = vld [vmem:[%s3 + $0x300] sm:$0xff]
      %v2152 = vld [vmem:[%s3 + $0x308] sm:$0xff]
      %v2153 = vld [vmem:[%s3 + $0x310] sm:$0xff]
      %v2154 = vld [vmem:[%s3 + $0x318] sm:$0xff]
      %v2155 = vld [vmem:[%s3 + $0x320] sm:$0xff]
      %v2156 = vld [vmem:[%s3 + $0x328] sm:$0xff]
      %v2157 = vld [vmem:[%s3 + $0x330] sm:$0xff]
      %v2158 = vld [vmem:[%s3 + $0x338] sm:$0xff]
      %v2159 = vld [vmem:[%s3 + $0x340] sm:$0xff]
      %v2160 = vld [vmem:[%s3 + $0x348] sm:$0xff]
      %v2161 = vld [vmem:[%s3 + $0x350] sm:$0xff]
      %v2162 = vld [vmem:[%s3 + $0x358] sm:$0xff]
      %v2163 = vld [vmem:[%s3 + $0x360] sm:$0xff]
      %v2164 = vld [vmem:[%s3 + $0x368] sm:$0xff]
      %v2165 = vld [vmem:[%s3 + $0x370] sm:$0xff]
      %v2166 = vld [vmem:[%s3 + $0x378] sm:$0xff]
      %v2167 = vld [vmem:[%s3 + $0x380] sm:$0xff]
      %v2168 = vld [vmem:[%s3 + $0x388] sm:$0xff]
      %v2169 = vld [vmem:[%s3 + $0x390] sm:$0xff]
      %v2170 = vld [vmem:[%s3 + $0x398] sm:$0xff]
      %v2171 = vld [vmem:[%s3 + $0x3a0] sm:$0xff]
      %v2172 = vld [vmem:[%s3 + $0x3a8] sm:$0xff]
      %v2173 = vld [vmem:[%s3 + $0x3b0] sm:$0xff]
      %v2174 = vld [vmem:[%s3 + $0x3b8] sm:$0xff]
      %v2175 = vld [vmem:[%s3 + $0x3c0] sm:$0xff]
      %v2176 = vld [vmem:[%s3 + $0x3c8] sm:$0xff]
      %v2177 = vld [vmem:[%s3 + $0x3d0] sm:$0xff]
      %v2178 = vld [vmem:[%s3 + $0x3d8] sm:$0xff]
      %v2179 = vld [vmem:[%s3 + $0x3e0] sm:$0xff]
      %v2180 = vld [vmem:[%s3 + $0x3e8] sm:$0xff]
      %v2181 = vld [vmem:[%s3 + $0x3f0] sm:$0xff]
      %v2182 = vld [vmem:[%s3 + $0x3f8] sm:$0xff]
      %v2183 = vld [vmem:[%s3 + $0x400] sm:$0xff]
      %v2184 = vld [vmem:[%s3 + $0x408] sm:$0xff]
      %v2185 = vld [vmem:[%s3 + $0x410] sm:$0xff]
      %v2186 = vld [vmem:[%s3 + $0x418] sm:$0xff]
      %v2187 = vld [vmem:[%s3 + $0x420] sm:$0xff]
      %v2188 = vld [vmem:[%s3 + $0x428] sm:$0xff]
      %v2189 = vld [vmem:[%s3 + $0x430] sm:$0xff]
      %v2190 = vld [vmem:[%s3 + $0x438] sm:$0xff]
      %v2191 = vld [vmem:[%s3 + $0x440] sm:$0xff]
      %v2192 = vld [vmem:[%s3 + $0x448] sm:$0xff]
      %v2193 = vld [vmem:[%s3 + $0x450] sm:$0xff]
      %v2194 = vld [vmem:[%s3 + $0x458] sm:$0xff]
      %v2195 = vld [vmem:[%s3 + $0x460] sm:$0xff]
      %v2196 = vld [vmem:[%s3 + $0x468] sm:$0xff]
      %v2197 = vld [vmem:[%s3 + $0x470] sm:$0xff]
      %v2198 = vld [vmem:[%s3 + $0x478] sm:$0xff]
      %2199 = vmatprep.subr.mxu0 0.0
      %2200 = vmatpush1.msra.mxu0 %v2151
      %2201 = vmatprep.subr.mxu0 0.0
      %2202 = vmatpush1.msra.mxu0 %v2152
      %2203 = vmatprep.subr.mxu0 0.0
      %2204 = vmatpush1.msra.mxu0 %v2153
      %2205 = vmatprep.subr.mxu0 0.0
      %2206 = vmatpush1.msra.mxu0 %v2154
      %2207 = vmatprep.subr.mxu0 0.0
      %2208 = vmatpush1.msra.mxu0 %v2155
      %2209 = vmatprep.subr.mxu0 0.0
      %2210 = vmatpush1.msra.mxu0 %v2156
      %2211 = vmatprep.subr.mxu0 0.0
      %2212 = vmatpush1.msra.mxu0 %v2157
      %2213 = vmatprep.subr.mxu0 0.0
      %2214 = vmatpush1.msra.mxu0 %v2158
      %2215 = vmatprep.subr.mxu0 0.0
      %2216 = vmatpush1.msra.mxu0 %v2159
      %2217 = vmatprep.subr.mxu0 0.0
      %2218 = vmatpush1.msra.mxu0 %v2160
      %2219 = vmatprep.subr.mxu0 0.0
      %2220 = vmatpush1.msra.mxu0 %v2161
      %2221 = vmatprep.subr.mxu0 0.0
      %2222 = vmatpush1.msra.mxu0 %v2162
      %2223 = vmatprep.subr.mxu0 0.0
      %2224 = vmatpush1.msra.mxu0 %v2163
      %2225 = vmatprep.subr.mxu0 0.0
      %2226 = vmatpush1.msra.mxu0 %v2164
      %2227 = vmatprep.subr.mxu0 0.0
      %2228 = vmatpush1.msra.mxu0 %v2165
      %2229 = vmatprep.subr.mxu0 0.0
      %2230 = vmatpush1.msra.mxu0 %v2166
      %2231 = vmatprep.subr.mxu0 0.0
      %2232 = vmatpush1.msra.mxu0 %v2167
      %2233 = vmatprep.subr.mxu0 0.0
      %2234 = vmatpush1.msra.mxu0 %v2168
      %2235 = vmatprep.subr.mxu0 0.0
      %2236 = vmatpush1.msra.mxu0 %v2169
      %2237 = vmatprep.subr.mxu0 0.0
      %2238 = vmatpush1.msra.mxu0 %v2170
      %2239 = vmatprep.subr.mxu0 0.0
      %2240 = vmatpush1.msra.mxu0 %v2171
      %2241 = vmatprep.subr.mxu0 0.0
      %2242 = vmatpush1.msra.mxu0 %v2172
      %2243 = vmatprep.subr.mxu0 0.0
      %2244 = vmatpush1.msra.mxu0 %v2173
      %2245 = vmatprep.subr.mxu0 0.0
      %2246 = vmatpush1.msra.mxu0 %v2174
      %2247 = vmatprep.subr.mxu0 0.0
      %2248 = vmatpush1.msra.mxu0 %v2175
      %2249 = vmatprep.subr.mxu0 0.0
      %2250 = vmatpush1.msra.mxu0 %v2176
      %2251 = vmatprep.subr.mxu0 0.0
      %2252 = vmatpush1.msra.mxu0 %v2177
      %2253 = vmatprep.subr.mxu0 0.0
      %2254 = vmatpush1.msra.mxu0 %v2178
      %2255 = vmatprep.subr.mxu0 0.0
      %2256 = vmatpush1.msra.mxu0 %v2179
      %2257 = vmatprep.subr.mxu0 0.0
      %2258 = vmatpush1.msra.mxu0 %v2180
      %2259 = vmatprep.subr.mxu0 0.0
      %2260 = vmatpush1.msra.mxu0 %v2181
      %2261 = vmatprep.subr.mxu0 0.0
      %2262 = vmatpush1.msra.mxu0 %v2182
      %2263 = vmatprep.mubr.f32.mxu0 %v1559
      %2264 = vmatmul.mubr.f32.gmra.mrb[0].mxu0 %v1517
      %v2265 = vpop.f32.mrb[0].mxu0
      %v2266 = vadd.f32 0.0, %v2265
      %v2267 = vpop.f32.mrb[0].mxu0
      %2268 = vmatprep.mubr.f32.mxu0 %v1562
      %2269 = vmatmul.mubr.f32.gmra.mrb[0].mxu0 %v1518
      %v2270 = vpop.f32.mrb[0].mxu0
      %v2271 = vadd.f32 0.0, %v2270
      %v2272 = vpop.f32.mrb[0].mxu0
      %2273 = vmatprep.mubr.f32.mxu0 %v1565
      %2274 = vmatmul.mubr.f32.gmra.mrb[0].mxu0 %v1519
      %v2275 = vpop.f32.mrb[0].mxu0
      %v2276 = vadd.f32 0.0, %v2275
      %v2277 = vpop.f32.mrb[0].mxu0
      %2278 = vmatprep.mubr.f32.mxu0 %v1568
      %2279 = vmatmul.mubr.f32.gmra.mrb[0].mxu0 %v1520
      %v2280 = vpop.f32.mrb[0].mxu0
      %v2281 = vadd.f32 0.0, %v2280
      %v2282 = vpop.f32.mrb[0].mxu0
      %2283 = vmatprep.mubr.f32.mxu0 %v1571
      %2284 = vmatmul.mubr.f32.gmra.mrb[0].mxu0 %v1521
      %v2285 = vpop.f32.mrb[0].mxu0
      %v2286 = vadd.f32 0.0, %v2285
      %v2287 = vpop.f32.mrb[0].mxu0
      %2288 = vmatprep.mubr.f32.mxu0 %v1574
      %2289 = vmatmul.mubr.f32.gmra.mrb[0].mxu0 %v1522
      %v2290 = vpop.f32.mrb[0].mxu0
      %v2291 = vadd.f32 0.0, %v2290
      %v2292 = vpop.f32.mrb[0].mxu0
      %2293 = vmatprep.mubr.f32.mxu0 %v1667
      %2294 = vmatmul.mubr.f32.gmra.mrb[0].mxu0 %v1523
      %v2295 = vpop.f32.mrb[0].mxu0
      %v2296 = vadd.f32 0.0, %v2295
      %v2297 = vpop.f32.mrb[0].mxu0
      %2298 = vmatprep.mubr.f32.mxu0 %v2145
      %2299 = vmatmul.mubr.f32.gmra.mrb[0].mxu0 %v1524
      %v2300 = vpop.f32.mrb[0].mxu0
      %v2301 = vadd.f32 0.0, %v2300
      %v2302 = vpop.f32.mrb[0].mxu0
      %2303 = vdwg.mxu0
      %2304 = vmatprep.subr.mxu0 0.0
      %2305 = vmatpush1.msra.mxu0 %v2183
      %2306 = vmatprep.subr.mxu0 0.0
      %2307 = vmatpush1.msra.mxu0 %v2184
      %2308 = vmatprep.subr.mxu0 0.0
      %2309 = vmatpush1.msra.mxu0 %v2185
      %2310 = vmatprep.subr.mxu0 0.0
      %2311 = vmatpush1.msra.mxu0 %v2186
      %2312 = vmatprep.subr.mxu0 0.0
      %2313 = vmatpush1.msra.mxu0 %v2187
      %2314 = vmatprep.subr.mxu0 0.0
      %2315 = vmatpush1.msra.mxu0 %v2188
      %2316 = vmatprep.subr.mxu0 0.0
      %2317 = vmatpush1.msra.mxu0 %v2189
      %2318 = vmatprep.subr.mxu0 0.0
      %2319 = vmatpush1.msra.mxu0 %v2190
      %2320 = vmatprep.subr.mxu0 0.0
      %2321 = vmatpush1.msra.mxu0 %v2191
      %2322 = vmatprep.subr.mxu0 0.0
      %2323 = vmatpush1.msra.mxu0 %v2192
      %2324 = vmatprep.subr.mxu0 0.0
      %2325 = vmatpush1.msra.mxu0 %v2193
      %2326 = vmatprep.subr.mxu0 0.0
      %2327 = vmatpush1.msra.mxu0 %v2194
      %2328 = vmatprep.subr.mxu0 0.0
      %2329 = vmatpush1.msra.mxu0 %v2195
      %2330 = vmatprep.subr.mxu0 0.0
      %2331 = vmatpush1.msra.mxu0 %v2196
      %2332 = vmatprep.subr.mxu0 0.0
      %2333 = vmatpush1.msra.mxu0 %v2197
      %2334 = vmatprep.subr.mxu0 0.0
      %2335 = vmatpush1.msra.mxu0 %v2198
      %2336 = vmatprep.subr.mxu0 0.0
      %2337 = vmatpush1.msra.mxu0 0.0
      %2338 = vmatprep.subr.mxu0 0.0
      %2339 = vmatpush1.msra.mxu0 0.0
      %2340 = vmatprep.subr.mxu0 0.0
      %2341 = vmatpush1.msra.mxu0 0.0
      %2342 = vmatprep.subr.mxu0 0.0
      %2343 = vmatpush1.msra.mxu0 0.0
      %2344 = vmatprep.subr.mxu0 0.0
      %2345 = vmatpush1.msra.mxu0 0.0
      %2346 = vmatprep.subr.mxu0 0.0
      %2347 = vmatpush1.msra.mxu0 0.0
      %2348 = vmatprep.subr.mxu0 0.0
      %2349 = vmatpush1.msra.mxu0 0.0
      %2350 = vmatprep.subr.mxu0 0.0
      %2351 = vmatpush1.msra.mxu0 0.0
      %2352 = vmatprep.subr.mxu0 0.0
      %2353 = vmatpush1.msra.mxu0 0.0
      %2354 = vmatprep.subr.mxu0 0.0
      %2355 = vmatpush1.msra.mxu0 0.0
      %2356 = vmatprep.subr.mxu0 0.0
      %2357 = vmatpush1.msra.mxu0 0.0
      %2358 = vmatprep.subr.mxu0 0.0
      %2359 = vmatpush1.msra.mxu0 0.0
      %2360 = vmatprep.subr.mxu0 0.0
      %2361 = vmatpush1.msra.mxu0 0.0
      %2362 = vmatprep.subr.mxu0 0.0
      %2363 = vmatpush1.msra.mxu0 0.0
      %2364 = vmatprep.subr.mxu0 0.0
      %2365 = vmatpush1.msra.mxu0 0.0
      %2366 = vmatprep.subr.mxu0 0.0
      %2367 = vmatpush1.msra.mxu0 0.0
      %2368 = vmatprep.mubr.f32.mxu0 0.0
      %2369 = vmatmul.mubr.f32.gmra.mrb[0].mxu0 %v1591
      %v2370 = vpop.f32.mrb[0].mxu0
      %v2371 = vadd.f32 %v2266, %v2370
      %v2372 = vpop.f32.mrb[0].mxu0
      %2373 = vmatprep.mubr.f32.mxu0 0.0
      %2374 = vmatmul.mubr.f32.gmra.mrb[0].mxu0 %v1594
      %v2375 = vpop.f32.mrb[0].mxu0
      %v2376 = vadd.f32 %v2271, %v2375
      %v2377 = vpop.f32.mrb[0].mxu0
      %2378 = vmatprep.mubr.f32.mxu0 0.0
      %2379 = vmatmul.mubr.f32.gmra.mrb[0].mxu0 %v1597
      %v2380 = vpop.f32.mrb[0].mxu0
      %v2381 = vadd.f32 %v2276, %v2380
      %v2382 = vpop.f32.mrb[0].mxu0
      %2383 = vmatprep.mubr.f32.mxu0 0.0
      %2384 = vmatmul.mubr.f32.gmra.mrb[0].mxu0 %v1600
      %v2385 = vpop.f32.mrb[0].mxu0
      %v2386 = vadd.f32 %v2281, %v2385
      %v2387 = vpop.f32.mrb[0].mxu0
      %2388 = vmatprep.mubr.f32.mxu0 0.0
      %2389 = vmatmul.mubr.f32.gmra.mrb[0].mxu0 %v1603
      %v2390 = vpop.f32.mrb[0].mxu0
      %v2391 = vadd.f32 %v2286, %v2390
      %v2392 = vpop.f32.mrb[0].mxu0
      %2393 = vmatprep.mubr.f32.mxu0 0.0
      %2394 = vmatmul.mubr.f32.gmra.mrb[0].mxu0 %v1606
      %v2395 = vpop.f32.mrb[0].mxu0
      %v2396 = vadd.f32 %v2291, %v2395
      %v2397 = vpop.f32.mrb[0].mxu0
      %2398 = vmatprep.mubr.f32.mxu0 0.0
      %2399 = vmatmul.mubr.f32.gmra.mrb[0].mxu0 %v1671
      %v2400 = vpop.f32.mrb[0].mxu0
      %v2401 = vadd.f32 %v2296, %v2400
      %v2402 = vpop.f32.mrb[0].mxu0
      %2403 = vmatprep.mubr.f32.mxu0 0.0
      %2404 = vmatmul.mubr.f32.gmra.mrb[0].mxu0 %v2149
      %v2405 = vpop.f32.mrb[0].mxu0
      %v2406 = vadd.f32 %v2301, %v2405
      %v2407 = vpop.f32.mrb[0].mxu0
      %2408 = vdwg.mxu0
      %v2409 = vadd.f32 %v2103, %v2371
      %v2410 = vadd.f32 %v2108, %v2376
      %v2411 = vadd.f32 %v2113, %v2381
      %v2412 = vadd.f32 %v2118, %v2386
      %v2413 = vadd.f32 %v2123, %v2391
      %v2414 = vadd.f32 %v2128, %v2396
      %v2415 = vadd.f32 %v2133, %v2401
      %v2416 = vadd.f32 %v2138, %v2406
      %v2417 = vld [vmem:[%s4] sm:$0x1]
      %v2419 = vlaneseq
      %v2420 = vshrl.u32 %v2419, 7
      %v2421 = vsub.s32 0, %v2420
      %v2422 = vrot.slane %v2417, %v2421
      %v2424 = vadd.f32 %v2409, %v2422
      %v2425 = vadd.f32 %v2410, %v2422
      %v2426 = vadd.f32 %v2411, %v2422
      %v2427 = vadd.f32 %v2412, %v2422
      %v2428 = vadd.f32 %v2413, %v2422
      %v2429 = vadd.f32 %v2414, %v2422
      %v2430 = vadd.f32 %v2415, %v2422
      %v2431 = vadd.f32 %v2416, %v2422
      %v2432 = vmax.f32 %v2424, 0.0
      %v2433 = vmax.f32 %v2425, 0.0
      %v2434 = vmax.f32 %v2426, 0.0
      %v2435 = vmax.f32 %v2427, 0.0
      %v2436 = vmax.f32 %v2428, 0.0
      %v2437 = vmax.f32 %v2429, 0.0
      %v2438 = vmax.f32 %v2430, 0.0
      %v2439 = vmax.f32 %v2431, 0.0
      %2440 = vst [vmem:[%s229] sm:$0xff] %v2432
      %2441 = vst [vmem:[%s229 + $0x8] sm:$0xff] %v2433
      %2442 = vst [vmem:[%s229 + $0x10] sm:$0xff] %v2434
      %2443 = vst [vmem:[%s229 + $0x18] sm:$0xff] %v2435
      %2444 = vst [vmem:[%s229 + $0x20] sm:$0xff] %v2436
      %2445 = vst [vmem:[%s229 + $0x28] sm:$0xff] %v2437
      %2446 = vst [vmem:[%s229 + $0x30] sm:$0xff] %v2438
      %2447 = vst [vmem:[%s229 + $0x38] sm:$0xff] %v2439
      %p2448 = scmp.lt.s32.totalorder %s16, 1
      %s2449 = scalar_select %p2448, %s16, 1
      %s2450 = smul.addr %s2449, 8
      %s2451 = smul.addr %s2450, 8
      %s2452 = scalar_lea.vmem %s5, %s2451
      // Predicated region
      $region41: #{_lambda_.1} parent=39 // pred_check
        %p2453 = pneg %p144
      $region42: #{_lambda_.1} parent=39 // pred_check_branch
        %2455 = sbr.rel (%p2453) target = $region44
      $region43: #{_lambda_.1} parent=39 // pred_region
        _
      $region44: #{_lambda_.1} parent=39 // pred_fallthru
        _
    $region40: #{_lambda_.1} parent=5 // pred_fallthru
      _
    %p2456 = scmp.le.s32.totalorder 2, %s11
    // Predicated region
    $region45: #{_lambda_.1} parent=5 // pred_check
      %p2457 = pneg %p2456
    $region46: #{_lambda_.1} parent=5 // pred_check_branch
      %2459 = sbr.rel (%p2457) target = $region48
    $region47: #{_lambda_.1} parent=5 // pred_region
      %s2460 = ssub.s32 %s11, 2
      // Predicated region
      $region49: #{_lambda_.1} parent=47 // pred_check
        %p2461 = pneg %p150
      $region50: #{_lambda_.1} parent=47 // pred_check_branch
        %2463 = sbr.rel (%p2461) target = $region52
      $region51: #{_lambda_.1} parent=47 // pred_region
        %p2464 = scmp.lt.s32.totalorder %s17, 1
        %s2465 = scalar_select %p2464, %s17, 1
        %s2466 = smul.addr %s2465, 8
        %s2467 = smul.addr %s2466, 8
        %s2468 = scalar_lea.vmem %s5, %s2467
      $region52: #{_lambda_.1} parent=47 // pred_fallthru
        _
    $region48: #{_lambda_.1} parent=5 // pred_fallthru
      _
  $region6: #{_lambda_.1} parent=0 // loop_footer
    %s15 = sadd.s32 1, %s11
  $region7: #{_lambda_.1} parent=0 // loop_footer_branch
    %10 = sbr.rel target = $region3
  $region8: #{_lambda_.1} parent=0 // loop_exit
    _

</llo_original>
